<compile_context>
chip_gen: v6e
topology: v6e:2x2x1
jax: 0.10.0
libtpu: 0.0.40
codegen_flags: <defaults>
</compile_context>

<pallas_src>
import numpy as np
import jax
import jax.numpy as jnp
from jax.experimental import pallas as pl
from jax.experimental.pallas import tpu as pltpu

# Max batch tile.  128 keeps ~3x VMEM headroom on v7x (64 MiB physical); on
# v5e/v6e (128 MiB) it is still large enough that the MXU, not per-step
# overhead, is the binding slot.  Must stay a multiple of 8.
MAX_TILE_B = 128


def _round_up(n, m):
    return ((n + m - 1) // m) * m


# ----------------------------------------------------------------------------
# Kernel
# ----------------------------------------------------------------------------
def fused_net_kernel(x_ref, t1_ref, t2_ref, wf_ref, b1_ref, b2_ref, bf_ref, o_ref):
    # x_ref : (28, TB, 28) f32   input rows x batch tile x input cols
    # t1_ref: (140, 256)  bf16   conv1 im2col Toeplitz, cols = parity*128 + 12q+... (12*10 padded to 128)
    # t2_ref: (5, 128, 256) bf16 conv2 Toeplitz per kernel row, cols = parity*128 + (4*20 padded to 128)
    # wf_ref: (4, 128, 128) bf16 fc weight per pooled output row (K,N zero-padded)
    # b1_ref/b2_ref/bf_ref: (1, 128) f32 biases (zero-padded lanes)
    # o_ref : (TB, 128) f32      lane-dense logits (cols 10..127 are zero)
    tb = x_ref.shape[1]
    xv = x_ref[...]                                               # (28, tb, 28)

    # ---- conv1 (5x5, 1->10) + 2x2 maxpool + bias + ReLU ---------------------
    # im2col over the 5 kernel rows -> one K=140 dot, both parities in N=256.
    lhs1 = jnp.concatenate(
        [xv[u:u + 24].reshape(24 * tb, 28) for u in range(5)], axis=1)
    acc1 = jnp.dot(lhs1.astype(jnp.bfloat16), t1_ref[...],
                   preferred_element_type=jnp.float32)           # (24*tb, 256)
    m1 = jnp.maximum(acc1[:, :128], acc1[:, 128:])                # pool over cols
    m1 = m1.reshape(12, 2, tb, 128)
    a1 = jnp.maximum(m1[:, 0], m1[:, 1])                          # pool over rows
    a1 = jnp.maximum(a1 + b1_ref[...], 0.0).astype(jnp.bfloat16)  # (12, tb, 128)

    # ---- conv2 (5x5, 10->20) + 2x2 maxpool + bias + ReLU --------------------
    acc2 = jnp.zeros((8 * tb, 256), jnp.float32)
    for u in range(5):                                            # conv kernel row
        lhs = a1[u:u + 8].reshape(8 * tb, 128)
        acc2 += jnp.dot(lhs, t2_ref[u], preferred_element_type=jnp.float32)
    m2 = jnp.maximum(acc2[:, :128], acc2[:, 128:]).reshape(4, 2, tb, 128)
    a2 = jnp.maximum(m2[:, 0], m2[:, 1])
    a2 = jnp.maximum(a2 + b2_ref[...], 0.0).astype(jnp.bfloat16)  # (4, tb, 128)

    # ---- fc (320 -> 10), lane-dense (padded to 128 output lanes) ------------
    out = jnp.zeros((tb, 128), jnp.float32) + bf_ref[...]
    for r in range(4):                                            # pooled output row
        out += jnp.dot(a2[r], wf_ref[r], preferred_element_type=jnp.float32)
    o_ref[...] = out


# ----------------------------------------------------------------------------
# Host-side weight preparation (tiny tensors, runs once per jit trace)
# ----------------------------------------------------------------------------
def _pool_parity_selector(n_in_cols, n_pooled, parity, ksize=5):
    """S[j_in, q, v] = 1 iff j_in == 2*q + parity + v (valid conv + stride-2 pool)."""
    s = np.zeros((n_in_cols, n_pooled, ksize), np.float32)
    for q in range(n_pooled):
        for v in range(ksize):
            s[2 * q + parity + v, q, v] = 1.0
    return s


_S1 = np.stack([_pool_parity_selector(28, 12, p) for p in range(2)])  # (2, 28, 12, 5)
_S2 = np.stack([_pool_parity_selector(12, 4, p) for p in range(2)])   # (2, 12, 4, 5)


def prepare_weights(params):
    f32 = jnp.float32
    # conv1: T1[u*28+j, e*128 + q*10+c] = w1[c, u, j-2q-e] inside the window, else 0
    w1 = params["conv1_w"].astype(f32)[:, 0]                      # (10, 5, 5) [c,u,v]
    t1 = jnp.einsum("ejqv,cuv->eujqc", _S1, w1).reshape(2, 5, 28, 120)
    t1 = jnp.pad(t1, ((0, 0), (0, 0), (0, 0), (0, 8)))            # 120 -> 128 lanes
    t1 = t1.transpose(1, 2, 0, 3).reshape(140, 256)               # (u*28+j, e*128+n)

    # conv2: T2[u, q*10+c, e*128 + s*20+d] = w2[d, c, u, q-2s-e] inside window, else 0
    w2 = params["conv2_w"].astype(f32)                            # (20,10,5,5) [d,c,u,v]
    t2 = jnp.einsum("eqsv,dcuv->euqcsd", _S2, w2).reshape(2, 5, 120, 80)
    t2 = jnp.pad(t2, ((0, 0), (0, 0), (0, 8), (0, 48)))           # K 120->128, N 80->128
    t2 = t2.transpose(1, 2, 0, 3).reshape(5, 128, 256)

    # fc: torch flattens (C=20, H=4, W=4); our activation lanes per row r are (s, d)
    wf = params["fc_w"].astype(f32).reshape(10, 20, 4, 4).transpose(2, 3, 1, 0)
    wf = wf.reshape(4, 80, 10)
    wf = jnp.pad(wf, ((0, 0), (0, 48), (0, 118)))                 # (4, 128, 128)

    b1 = jnp.pad(jnp.tile(params["conv1_b"].astype(f32), 12), (0, 8)).reshape(1, 128)
    b2 = jnp.pad(jnp.tile(params["conv2_b"].astype(f32), 4), (0, 48)).reshape(1, 128)
    bf = jnp.pad(params["fc_b"].astype(f32), (0, 118)).reshape(1, 128)

    return (t1.astype(jnp.bfloat16), t2.astype(jnp.bfloat16), wf.astype(jnp.bfloat16),
            b1, b2, bf)


def _vmem_limit_bytes(tile_b):
    """Rough per-step VMEM footprint (bytes) with margin, capped below v7x physical."""
    F, H = 4, 2  # f32, bf16
    in_tile = 28 * tile_b * 28 * F
    out_tile = tile_b * 128 * F
    weights = (140 * 256 + 5 * 128 * 256 + 4 * 128 * 128) * H + 3 * 128 * F
    interm = (24 * tile_b * 140 * (F + H)          # im2col lhs (f32 build + bf16 copy)
              + 24 * tile_b * 256 * F              # conv1 accumulator
              + 12 * tile_b * 128 * (2 * F + H)    # pooled halves + a1
              + 8 * tile_b * 256 * F               # conv2 accumulator
              + 4 * tile_b * 128 * (2 * F + H)     # pooled halves + a2
              + tile_b * 128 * F)                  # fc accumulator
    est = 2 * (in_tile + out_tile + weights) + interm   # x2 for pipeline double-buffers
    return int(min(64 * 2**20, max(16 * 2**20, 3 * est)))


# ----------------------------------------------------------------------------
# Forward
# ----------------------------------------------------------------------------
@jax.jit
def net_forward(params, x):
    # x: (B, 1, 28, 28) NCHW
    B = x.shape[0]
    assert x.shape[1:] == (1, 28, 28), "Net requires 28x28 single-channel input"
    tile_b = min(MAX_TILE_B, _round_up(B, 8))
    Bp = _round_up(B, tile_b)
    # On v7x (2 TensorCores) large batches (B >= 2*MAX_TILE_B) naturally give
    # >= 2 parallel grid steps; tiny batches have too little work to split.

    # (H, B, W): batch in sublanes, image width in lanes
    xr = jnp.transpose(x[:, 0, :, :], (1, 0, 2)).astype(jnp.float32)
    if Bp != B:
        xr = jnp.pad(xr, ((0, 0), (0, Bp - B), (0, 0)))
    t1, t2, wf, b1, b2, bf = prepare_weights(params)

    # TODO(synk): the in-forward `print('======== batch_size', ...)` is host-side
    # debug output and is intentionally omitted.
    out = pl.pallas_call(
        fused_net_kernel,
        out_shape=jax.ShapeDtypeStruct((Bp, 128), jnp.float32),
        grid=(Bp // tile_b,),
        in_specs=[
            pl.BlockSpec((28, tile_b, 28), lambda i: (0, i, 0)),   # input tile
            pl.BlockSpec((140, 256), lambda i: (0, 0)),            # resident weights
            pl.BlockSpec((5, 128, 256), lambda i: (0, 0, 0)),
            pl.BlockSpec((4, 128, 128), lambda i: (0, 0, 0)),
            pl.BlockSpec((1, 128), lambda i: (0, 0)),
            pl.BlockSpec((1, 128), lambda i: (0, 0)),
            pl.BlockSpec((1, 128), lambda i: (0, 0)),
        ],
        out_specs=pl.BlockSpec((tile_b, 128), lambda i: (i, 0)),
        compiler_params=pltpu.CompilerParams(
            dimension_semantics=("parallel",),
            vmem_limit_bytes=_vmem_limit_bytes(tile_b),
        ),
    )(xr, t1, t2, wf, b1, b2, bf)
    return out[:B, :10]


# ----------------------------------------------------------------------------
# Pure-JAX f32 reference (kept for validation; kernel uses bf16 MXU operands)
# ----------------------------------------------------------------------------
def net_forward_reference(params, x):
    def conv(a, w, b):
        y = jax.lax.conv_general_dilated(
            a, w, window_strides=(1, 1), padding="VALID",
            dimension_numbers=("NCHW", "OIHW", "NCHW"))
        return y + b[None, :, None, None]

    def pool2(a):
        n, c, h, w = a.shape
        return a.reshape(n, c, h // 2, 2, w // 2, 2).max(axis=(3, 5))

    a = jax.nn.relu(pool2(conv(x, params["conv1_w"], params["conv1_b"])))
    a = jax.nn.relu(pool2(conv(a, params["conv2_w"], params["conv2_b"])))
    a = a.reshape(x.shape[0], -1)
    return a @ params["fc_w"].T + params["fc_b"]


# ----------------------------------------------------------------------------
# Deterministic synthetic params (torch-style U(-1/sqrt(fan_in), 1/sqrt(fan_in)))
# ----------------------------------------------------------------------------
def init_params(key):
    def uniform(k, shape, fan_in):
        bound = 1.0 / (fan_in ** 0.5)
        return jax.random.uniform(k, shape, jnp.float32, -bound, bound)

    ks = jax.random.split(key, 6)
    return {
        "conv1_w": uniform(ks[0], (10, 1, 5, 5), 1 * 5 * 5),
        "conv1_b": uniform(ks[1], (10,), 1 * 5 * 5),
        "conv2_w": uniform(ks[2], (20, 10, 5, 5), 10 * 5 * 5),
        "conv2_b": uniform(ks[3], (20,), 10 * 5 * 5),
        "fc_w": uniform(ks[4], (10, 320), 320),
        "fc_b": uniform(ks[5], (10,), 320),
    }


if __name__ == "__main__":
    key = jax.random.PRNGKey(0)
    pkey, xkey = jax.random.split(key)
    params = init_params(pkey)
    # batch=2, MNIST-shaped input (28x28 is required so that fc in_features=320)
    x = jax.random.normal(xkey, (2, 1, 28, 28), dtype=jnp.float32)

    logits = net_forward(params, x)
    jax.block_until_ready(logits)
    assert logits.shape == (2, 10) and logits.dtype == jnp.float32

    ref = net_forward_reference(params, x)
    # bf16 MXU operands -> not bit-exact vs f32 reference; generous tolerance.
    assert bool(jnp.allclose(logits, ref, rtol=5e-2, atol=5e-2)), "mismatch vs f32 reference"

    print("KERNEL_OK")
</pallas_src>

<mosaic_0001>
module attributes {stable_mosaic.version = 11 : i64} {
  func.func @fused_net_kernel(%arg0: i32, %arg1: memref<28x8x28xf32, #tpu.memory_space<vmem>>, %arg2: memref<140x256xbf16, #tpu.memory_space<vmem>>, %arg3: memref<5x128x256xbf16, #tpu.memory_space<vmem>>, %arg4: memref<4x128x128xbf16, #tpu.memory_space<vmem>>, %arg5: memref<1x128xf32, #tpu.memory_space<vmem>>, %arg6: memref<1x128xf32, #tpu.memory_space<vmem>>, %arg7: memref<1x128xf32, #tpu.memory_space<vmem>>, %arg8: memref<8x128xf32, #tpu.memory_space<vmem>>) attributes {dimension_semantics = [#tpu.dimension_semantics<parallel>], iteration_bounds = array<i64: 1>, scalar_prefetch = 0 : i64, scratch_operands = 0 : i64, tpu.core_type = #tpu.core_type<tc>, window_params = [{transform_indices = @transform_0, window_bounds = array<i64: 28, 8, 28>}, {pipeline_mode = #tpu.pipeline_mode<synchronous>, transform_indices = @transform_1, window_bounds = array<i64: 140, 256>}, {pipeline_mode = #tpu.pipeline_mode<synchronous>, transform_indices = @transform_2, window_bounds = array<i64: 5, 128, 256>}, {pipeline_mode = #tpu.pipeline_mode<synchronous>, transform_indices = @transform_3, window_bounds = array<i64: 4, 128, 128>}, {pipeline_mode = #tpu.pipeline_mode<synchronous>, transform_indices = @transform_4, window_bounds = array<i64: 1, 128>}, {pipeline_mode = #tpu.pipeline_mode<synchronous>, transform_indices = @transform_5, window_bounds = array<i64: 1, 128>}, {pipeline_mode = #tpu.pipeline_mode<synchronous>, transform_indices = @transform_6, window_bounds = array<i64: 1, 128>}, {transform_indices = @transform_7, window_bounds = array<i64: 8, 128>}]} {
    %c0 = arith.constant 0 : index
    %c0_0 = arith.constant 0 : index
    %c0_1 = arith.constant 0 : index
    %0 = vector.load %arg1[%c0, %c0_0, %c0_1] : memref<28x8x28xf32, #tpu.memory_space<vmem>>, vector<28x8x28xf32>
    %1 = vector.extract_strided_slice %0 {offsets = [0, 0, 0], sizes = [24, 8, 28], strides = [1, 1, 1]} : vector<28x8x28xf32> to vector<24x8x28xf32>
    %2 = vector.shape_cast %1 : vector<24x8x28xf32> to vector<192x28xf32>
    %3 = vector.extract_strided_slice %0 {offsets = [1, 0, 0], sizes = [24, 8, 28], strides = [1, 1, 1]} : vector<28x8x28xf32> to vector<24x8x28xf32>
    %4 = vector.shape_cast %3 : vector<24x8x28xf32> to vector<192x28xf32>
    %5 = vector.extract_strided_slice %0 {offsets = [2, 0, 0], sizes = [24, 8, 28], strides = [1, 1, 1]} : vector<28x8x28xf32> to vector<24x8x28xf32>
    %6 = vector.shape_cast %5 : vector<24x8x28xf32> to vector<192x28xf32>
    %7 = vector.extract_strided_slice %0 {offsets = [3, 0, 0], sizes = [24, 8, 28], strides = [1, 1, 1]} : vector<28x8x28xf32> to vector<24x8x28xf32>
    %8 = vector.shape_cast %7 : vector<24x8x28xf32> to vector<192x28xf32>
    %9 = vector.extract_strided_slice %0 {offsets = [4, 0, 0], sizes = [24, 8, 28], strides = [1, 1, 1]} : vector<28x8x28xf32> to vector<24x8x28xf32>
    %10 = vector.shape_cast %9 : vector<24x8x28xf32> to vector<192x28xf32>
    %11 = tpu.concatenate %2, %4, %6, %8, %10 in 1 : vector<192x28xf32>, vector<192x28xf32>, vector<192x28xf32>, vector<192x28xf32>, vector<192x28xf32> -> vector<192x140xf32>
    %12 = arith.truncf %11 : vector<192x140xf32> to vector<192x140xbf16>
    %c0_2 = arith.constant 0 : index
    %c0_3 = arith.constant 0 : index
    %13 = vector.load %arg2[%c0_2, %c0_3] : memref<140x256xbf16, #tpu.memory_space<vmem>>, vector<140x256xbf16>
    %cst = arith.constant dense<0.000000e+00> : vector<192x256xf32>
    %14 = tpu.matmul %12, %13, %cst {dimension_numbers = #tpu.dot_dimension_numbers<[1], [0], [0], [1], [0, 0, 1, 1], [], []>} : vector<192x140xbf16>, vector<140x256xbf16>, vector<192x256xf32> -> vector<192x256xf32>
    %15 = vector.extract_strided_slice %14 {offsets = [0, 0], sizes = [192, 128], strides = [1, 1]} : vector<192x256xf32> to vector<192x128xf32>
    %16 = vector.extract_strided_slice %14 {offsets = [0, 128], sizes = [192, 128], strides = [1, 1]} : vector<192x256xf32> to vector<192x128xf32>
    %17 = arith.maximumf %15, %16 : vector<192x128xf32>
    %18 = vector.shape_cast %17 : vector<192x128xf32> to vector<12x2x8x128xf32>
    %19 = vector.extract_strided_slice %18 {offsets = [0, 0, 0, 0], sizes = [12, 1, 8, 128], strides = [1, 1, 1, 1]} : vector<12x2x8x128xf32> to vector<12x1x8x128xf32>
    %20 = vector.shape_cast %19 : vector<12x1x8x128xf32> to vector<12x8x128xf32>
    %21 = vector.extract_strided_slice %18 {offsets = [0, 1, 0, 0], sizes = [12, 1, 8, 128], strides = [1, 1, 1, 1]} : vector<12x2x8x128xf32> to vector<12x1x8x128xf32>
    %22 = vector.shape_cast %21 : vector<12x1x8x128xf32> to vector<12x8x128xf32>
    %23 = arith.maximumf %20, %22 : vector<12x8x128xf32>
    %c0_4 = arith.constant 0 : index
    %c0_5 = arith.constant 0 : index
    %24 = vector.load %arg5[%c0_4, %c0_5] : memref<1x128xf32, #tpu.memory_space<vmem>>, vector<1x128xf32>
    %25 = vector.shape_cast %24 : vector<1x128xf32> to vector<1x1x128xf32>
    %26 = vector.broadcast %25 : vector<1x1x128xf32> to vector<12x8x128xf32>
    %27 = arith.addf %23, %26 : vector<12x8x128xf32>
    %cst_6 = arith.constant 0.000000e+00 : f32
    %28 = vector.broadcast %cst_6 : f32 to vector<12x8x128xf32>
    %29 = arith.maximumf %27, %28 : vector<12x8x128xf32>
    %30 = arith.truncf %29 : vector<12x8x128xf32> to vector<12x8x128xbf16>
    %cst_7 = arith.constant 0.000000e+00 : f32
    %31 = vector.broadcast %cst_7 : f32 to vector<64x256xf32>
    %32 = vector.extract_strided_slice %30 {offsets = [0, 0, 0], sizes = [8, 8, 128], strides = [1, 1, 1]} : vector<12x8x128xbf16> to vector<8x8x128xbf16>
    %33 = vector.shape_cast %32 : vector<8x8x128xbf16> to vector<64x128xbf16>
    %c0_8 = arith.constant 0 : index
    %c0_9 = arith.constant 0 : index
    %c0_10 = arith.constant 0 : index
    %34 = vector.load %arg3[%c0_8, %c0_9, %c0_10] : memref<5x128x256xbf16, #tpu.memory_space<vmem>>, vector<1x128x256xbf16>
    %35 = vector.shape_cast %34 : vector<1x128x256xbf16> to vector<128x256xbf16>
    %cst_11 = arith.constant dense<0.000000e+00> : vector<64x256xf32>
    %36 = tpu.matmul %33, %35, %cst_11 {dimension_numbers = #tpu.dot_dimension_numbers<[1], [0], [0], [1], [0, 0, 1, 1], [], []>} : vector<64x128xbf16>, vector<128x256xbf16>, vector<64x256xf32> -> vector<64x256xf32>
    %37 = arith.addf %31, %36 : vector<64x256xf32>
    %38 = vector.extract_strided_slice %30 {offsets = [1, 0, 0], sizes = [8, 8, 128], strides = [1, 1, 1]} : vector<12x8x128xbf16> to vector<8x8x128xbf16>
    %39 = vector.shape_cast %38 : vector<8x8x128xbf16> to vector<64x128xbf16>
    %c1 = arith.constant 1 : index
    %c0_12 = arith.constant 0 : index
    %c0_13 = arith.constant 0 : index
    %40 = vector.load %arg3[%c1, %c0_12, %c0_13] : memref<5x128x256xbf16, #tpu.memory_space<vmem>>, vector<1x128x256xbf16>
    %41 = vector.shape_cast %40 : vector<1x128x256xbf16> to vector<128x256xbf16>
    %cst_14 = arith.constant dense<0.000000e+00> : vector<64x256xf32>
    %42 = tpu.matmul %39, %41, %cst_14 {dimension_numbers = #tpu.dot_dimension_numbers<[1], [0], [0], [1], [0, 0, 1, 1], [], []>} : vector<64x128xbf16>, vector<128x256xbf16>, vector<64x256xf32> -> vector<64x256xf32>
    %43 = arith.addf %37, %42 : vector<64x256xf32>
    %44 = vector.extract_strided_slice %30 {offsets = [2, 0, 0], sizes = [8, 8, 128], strides = [1, 1, 1]} : vector<12x8x128xbf16> to vector<8x8x128xbf16>
    %45 = vector.shape_cast %44 : vector<8x8x128xbf16> to vector<64x128xbf16>
    %c2 = arith.constant 2 : index
    %c0_15 = arith.constant 0 : index
    %c0_16 = arith.constant 0 : index
    %46 = vector.load %arg3[%c2, %c0_15, %c0_16] : memref<5x128x256xbf16, #tpu.memory_space<vmem>>, vector<1x128x256xbf16>
    %47 = vector.shape_cast %46 : vector<1x128x256xbf16> to vector<128x256xbf16>
    %cst_17 = arith.constant dense<0.000000e+00> : vector<64x256xf32>
    %48 = tpu.matmul %45, %47, %cst_17 {dimension_numbers = #tpu.dot_dimension_numbers<[1], [0], [0], [1], [0, 0, 1, 1], [], []>} : vector<64x128xbf16>, vector<128x256xbf16>, vector<64x256xf32> -> vector<64x256xf32>
    %49 = arith.addf %43, %48 : vector<64x256xf32>
    %50 = vector.extract_strided_slice %30 {offsets = [3, 0, 0], sizes = [8, 8, 128], strides = [1, 1, 1]} : vector<12x8x128xbf16> to vector<8x8x128xbf16>
    %51 = vector.shape_cast %50 : vector<8x8x128xbf16> to vector<64x128xbf16>
    %c3 = arith.constant 3 : index
    %c0_18 = arith.constant 0 : index
    %c0_19 = arith.constant 0 : index
    %52 = vector.load %arg3[%c3, %c0_18, %c0_19] : memref<5x128x256xbf16, #tpu.memory_space<vmem>>, vector<1x128x256xbf16>
    %53 = vector.shape_cast %52 : vector<1x128x256xbf16> to vector<128x256xbf16>
    %cst_20 = arith.constant dense<0.000000e+00> : vector<64x256xf32>
    %54 = tpu.matmul %51, %53, %cst_20 {dimension_numbers = #tpu.dot_dimension_numbers<[1], [0], [0], [1], [0, 0, 1, 1], [], []>} : vector<64x128xbf16>, vector<128x256xbf16>, vector<64x256xf32> -> vector<64x256xf32>
    %55 = arith.addf %49, %54 : vector<64x256xf32>
    %56 = vector.extract_strided_slice %30 {offsets = [4, 0, 0], sizes = [8, 8, 128], strides = [1, 1, 1]} : vector<12x8x128xbf16> to vector<8x8x128xbf16>
    %57 = vector.shape_cast %56 : vector<8x8x128xbf16> to vector<64x128xbf16>
    %c4 = arith.constant 4 : index
    %c0_21 = arith.constant 0 : index
    %c0_22 = arith.constant 0 : index
    %58 = vector.load %arg3[%c4, %c0_21, %c0_22] : memref<5x128x256xbf16, #tpu.memory_space<vmem>>, vector<1x128x256xbf16>
    %59 = vector.shape_cast %58 : vector<1x128x256xbf16> to vector<128x256xbf16>
    %cst_23 = arith.constant dense<0.000000e+00> : vector<64x256xf32>
    %60 = tpu.matmul %57, %59, %cst_23 {dimension_numbers = #tpu.dot_dimension_numbers<[1], [0], [0], [1], [0, 0, 1, 1], [], []>} : vector<64x128xbf16>, vector<128x256xbf16>, vector<64x256xf32> -> vector<64x256xf32>
    %61 = arith.addf %55, %60 : vector<64x256xf32>
    %62 = vector.extract_strided_slice %61 {offsets = [0, 0], sizes = [64, 128], strides = [1, 1]} : vector<64x256xf32> to vector<64x128xf32>
    %63 = vector.extract_strided_slice %61 {offsets = [0, 128], sizes = [64, 128], strides = [1, 1]} : vector<64x256xf32> to vector<64x128xf32>
    %64 = arith.maximumf %62, %63 : vector<64x128xf32>
    %65 = vector.shape_cast %64 : vector<64x128xf32> to vector<4x2x8x128xf32>
    %66 = vector.extract_strided_slice %65 {offsets = [0, 0, 0, 0], sizes = [4, 1, 8, 128], strides = [1, 1, 1, 1]} : vector<4x2x8x128xf32> to vector<4x1x8x128xf32>
    %67 = vector.shape_cast %66 : vector<4x1x8x128xf32> to vector<4x8x128xf32>
    %68 = vector.extract_strided_slice %65 {offsets = [0, 1, 0, 0], sizes = [4, 1, 8, 128], strides = [1, 1, 1, 1]} : vector<4x2x8x128xf32> to vector<4x1x8x128xf32>
    %69 = vector.shape_cast %68 : vector<4x1x8x128xf32> to vector<4x8x128xf32>
    %70 = arith.maximumf %67, %69 : vector<4x8x128xf32>
    %c0_24 = arith.constant 0 : index
    %c0_25 = arith.constant 0 : index
    %71 = vector.load %arg6[%c0_24, %c0_25] : memref<1x128xf32, #tpu.memory_space<vmem>>, vector<1x128xf32>
    %72 = vector.shape_cast %71 : vector<1x128xf32> to vector<1x1x128xf32>
    %73 = vector.broadcast %72 : vector<1x1x128xf32> to vector<4x8x128xf32>
    %74 = arith.addf %70, %73 : vector<4x8x128xf32>
    %cst_26 = arith.constant 0.000000e+00 : f32
    %75 = vector.broadcast %cst_26 : f32 to vector<4x8x128xf32>
    %76 = arith.maximumf %74, %75 : vector<4x8x128xf32>
    %77 = arith.truncf %76 : vector<4x8x128xf32> to vector<4x8x128xbf16>
    %cst_27 = arith.constant 0.000000e+00 : f32
    %78 = vector.broadcast %cst_27 : f32 to vector<8x128xf32>
    %c0_28 = arith.constant 0 : index
    %c0_29 = arith.constant 0 : index
    %79 = vector.load %arg7[%c0_28, %c0_29] : memref<1x128xf32, #tpu.memory_space<vmem>>, vector<1x128xf32>
    %80 = vector.broadcast %79 : vector<1x128xf32> to vector<8x128xf32>
    %81 = arith.addf %78, %80 : vector<8x128xf32>
    %82 = vector.extract_strided_slice %77 {offsets = [0, 0, 0], sizes = [1, 8, 128], strides = [1, 1, 1]} : vector<4x8x128xbf16> to vector<1x8x128xbf16>
    %83 = vector.shape_cast %82 : vector<1x8x128xbf16> to vector<8x128xbf16>
    %c0_30 = arith.constant 0 : index
    %c0_31 = arith.constant 0 : index
    %c0_32 = arith.constant 0 : index
    %84 = vector.load %arg4[%c0_30, %c0_31, %c0_32] : memref<4x128x128xbf16, #tpu.memory_space<vmem>>, vector<1x128x128xbf16>
    %85 = vector.shape_cast %84 : vector<1x128x128xbf16> to vector<128x128xbf16>
    %cst_33 = arith.constant dense<0.000000e+00> : vector<8x128xf32>
    %86 = tpu.matmul %83, %85, %cst_33 {dimension_numbers = #tpu.dot_dimension_numbers<[1], [0], [0], [1], [0, 0, 1, 1], [], []>} : vector<8x128xbf16>, vector<128x128xbf16>, vector<8x128xf32> -> vector<8x128xf32>
    %87 = arith.addf %81, %86 : vector<8x128xf32>
    %88 = vector.extract_strided_slice %77 {offsets = [1, 0, 0], sizes = [1, 8, 128], strides = [1, 1, 1]} : vector<4x8x128xbf16> to vector<1x8x128xbf16>
    %89 = vector.shape_cast %88 : vector<1x8x128xbf16> to vector<8x128xbf16>
    %c1_34 = arith.constant 1 : index
    %c0_35 = arith.constant 0 : index
    %c0_36 = arith.constant 0 : index
    %90 = vector.load %arg4[%c1_34, %c0_35, %c0_36] : memref<4x128x128xbf16, #tpu.memory_space<vmem>>, vector<1x128x128xbf16>
    %91 = vector.shape_cast %90 : vector<1x128x128xbf16> to vector<128x128xbf16>
    %cst_37 = arith.constant dense<0.000000e+00> : vector<8x128xf32>
    %92 = tpu.matmul %89, %91, %cst_37 {dimension_numbers = #tpu.dot_dimension_numbers<[1], [0], [0], [1], [0, 0, 1, 1], [], []>} : vector<8x128xbf16>, vector<128x128xbf16>, vector<8x128xf32> -> vector<8x128xf32>
    %93 = arith.addf %87, %92 : vector<8x128xf32>
    %94 = vector.extract_strided_slice %77 {offsets = [2, 0, 0], sizes = [1, 8, 128], strides = [1, 1, 1]} : vector<4x8x128xbf16> to vector<1x8x128xbf16>
    %95 = vector.shape_cast %94 : vector<1x8x128xbf16> to vector<8x128xbf16>
    %c2_38 = arith.constant 2 : index
    %c0_39 = arith.constant 0 : index
    %c0_40 = arith.constant 0 : index
    %96 = vector.load %arg4[%c2_38, %c0_39, %c0_40] : memref<4x128x128xbf16, #tpu.memory_space<vmem>>, vector<1x128x128xbf16>
    %97 = vector.shape_cast %96 : vector<1x128x128xbf16> to vector<128x128xbf16>
    %cst_41 = arith.constant dense<0.000000e+00> : vector<8x128xf32>
    %98 = tpu.matmul %95, %97, %cst_41 {dimension_numbers = #tpu.dot_dimension_numbers<[1], [0], [0], [1], [0, 0, 1, 1], [], []>} : vector<8x128xbf16>, vector<128x128xbf16>, vector<8x128xf32> -> vector<8x128xf32>
    %99 = arith.addf %93, %98 : vector<8x128xf32>
    %100 = vector.extract_strided_slice %77 {offsets = [3, 0, 0], sizes = [1, 8, 128], strides = [1, 1, 1]} : vector<4x8x128xbf16> to vector<1x8x128xbf16>
    %101 = vector.shape_cast %100 : vector<1x8x128xbf16> to vector<8x128xbf16>
    %c3_42 = arith.constant 3 : index
    %c0_43 = arith.constant 0 : index
    %c0_44 = arith.constant 0 : index
    %102 = vector.load %arg4[%c3_42, %c0_43, %c0_44] : memref<4x128x128xbf16, #tpu.memory_space<vmem>>, vector<1x128x128xbf16>
    %103 = vector.shape_cast %102 : vector<1x128x128xbf16> to vector<128x128xbf16>
    %cst_45 = arith.constant dense<0.000000e+00> : vector<8x128xf32>
    %104 = tpu.matmul %101, %103, %cst_45 {dimension_numbers = #tpu.dot_dimension_numbers<[1], [0], [0], [1], [0, 0, 1, 1], [], []>} : vector<8x128xbf16>, vector<128x128xbf16>, vector<8x128xf32> -> vector<8x128xf32>
    %105 = arith.addf %99, %104 : vector<8x128xf32>
    %c0_46 = arith.constant 0 : index
    %c0_47 = arith.constant 0 : index
    %106 = vector.load %arg8[%c0_46, %c0_47] : memref<8x128xf32, #tpu.memory_space<vmem>>, vector<8x128xf32>
    tpu.vector_store %arg8[%c0_46, %c0_47], %105 {strides = array<i32>} : memref<8x128xf32, #tpu.memory_space<vmem>>, vector<8x128xf32>,
    return
  }
  func.func @transform_0(%arg0: i32) -> (i32, i32, i32) {
    %c0_i32 = arith.constant 0 : i32
    %c0_i32_0 = arith.constant 0 : i32
    %c0_i32_1 = arith.constant 0 : i32
    return %c0_i32, %arg0, %c0_i32_0 : i32, i32, i32
  }
  func.func @transform_1(%arg0: i32) -> (i32, i32) {
    %c0_i32 = arith.constant 0 : i32
    %c0_i32_0 = arith.constant 0 : i32
    %c0_i32_1 = arith.constant 0 : i32
    return %c0_i32, %c0_i32_0 : i32, i32
  }
  func.func @transform_2(%arg0: i32) -> (i32, i32, i32) {
    %c0_i32 = arith.constant 0 : i32
    %c0_i32_0 = arith.constant 0 : i32
    %c0_i32_1 = arith.constant 0 : i32
    %c0_i32_2 = arith.constant 0 : i32
    return %c0_i32, %c0_i32_0, %c0_i32_1 : i32, i32, i32
  }
  func.func @transform_3(%arg0: i32) -> (i32, i32, i32) {
    %c0_i32 = arith.constant 0 : i32
    %c0_i32_0 = arith.constant 0 : i32
    %c0_i32_1 = arith.constant 0 : i32
    %c0_i32_2 = arith.constant 0 : i32
    return %c0_i32, %c0_i32_0, %c0_i32_1 : i32, i32, i32
  }
  func.func @transform_4(%arg0: i32) -> (i32, i32) {
    %c0_i32 = arith.constant 0 : i32
    %c0_i32_0 = arith.constant 0 : i32
    %c0_i32_1 = arith.constant 0 : i32
    return %c0_i32, %c0_i32_0 : i32, i32
  }
  func.func @transform_5(%arg0: i32) -> (i32, i32) {
    %c0_i32 = arith.constant 0 : i32
    %c0_i32_0 = arith.constant 0 : i32
    %c0_i32_1 = arith.constant 0 : i32
    return %c0_i32, %c0_i32_0 : i32, i32
  }
  func.func @transform_6(%arg0: i32) -> (i32, i32) {
    %c0_i32 = arith.constant 0 : i32
    %c0_i32_0 = arith.constant 0 : i32
    %c0_i32_1 = arith.constant 0 : i32
    return %c0_i32, %c0_i32_0 : i32, i32
  }
  func.func @transform_7(%arg0: i32) -> (i32, i32) {
    %c0_i32 = arith.constant 0 : i32
    %c0_i32_0 = arith.constant 0 : i32
    return %arg0, %c0_i32 : i32, i32
  }
}

</mosaic_0001>

<llo_original>
// kernel: tile.18
$region0: #{tile.18}
  #allocation2 [shape = 's32[1]{0}', space=sflag, size = 0x4, scoped, tag = 'scoped memory for tile.18']
  %s0 = inlined_call_operand.hbm [shape: f32[20], index: 0, kind: input, shape index: {}]
  %s1 = inlined_call_operand.vmem [shape: f32[4,20], index: 1, kind: output, shape index: {}]
  $region1: #{tile.18} parent=0
    #allocation0 [shape = 'u8[512]{0}', space=vmem, size = 0x400, scoped, tag = 'operand span for operand 0']
    #allocation1 [shape = 's32[1]{0}', space=sflag, size = 0x4, scoped, tag = 'scoped memory for tile.18']
    %2 = vsyncpa [#allocation1], 0
    // Predicated region
    $region2: #{tile.18} parent=1 // pred_check
      _
    $region3: #{tile.18} parent=1 // pred_check_branch
      %4 = sbr.rel (0) target = $region5
    $region4: #{tile.18} parent=1 // pred_region
      %s6 = ssub.s32 16, 16
      %7 = vsyncadd [#allocation1], %s6
      %s9 = sshll.u32 [#allocation0], 4
      %s10 = int_to_ptr.vmem [resolvable:$true] %s9
      %12 = dma.hbm_to_vmem [thread:$0]  %s0, 16, %s10, [#allocation1]
    $region5: #{tile.18} parent=1 // pred_fallthru
      _
    // Predicated region
    $region6: #{tile.18} parent=1 // pred_check
      _
    $region7: #{tile.18} parent=1 // pred_check_branch
      %14 = sbr.rel (0) target = $region9
    $region8: #{tile.18} parent=1 // pred_region
      %15 = dma.done [#allocation1], 16
    $region9: #{tile.18} parent=1 // pred_fallthru
      _
    %v16 = vld [vmem:[#allocation0] ss:$0 sm:$0xff]
    %17 = vst [vmem:[%s1] sm:$0xf] %v16
    %18 = vsyncpa [#allocation1], 1

// kernel: tile.19
$region0: #{tile.19}
  %s0 = inlined_call_operand.vmem [shape: f32[4,20], index: 0, kind: input, shape index: {}]
  %s1 = inlined_call_operand.vmem [shape: f32[80], index: 1, kind: output, shape index: {}]
  $region1: #{tile.19} parent=0
    #allocation0 [shape = 'u8[4096]{0}', space=vmem, size = 0x1000, scoped, tag = 'scoped mem for output reshape']
    #allocation1 [shape = 'u8[4096]{0}', space=vmem, size = 0x1000, scoped, tag = 'scoped mem for input reshape']
    %s3 = sshll.u32 1, 4
    %s4 = ssub.s32 %s3, 1
    %v5 = vld [vmem:[%s0] sm:%s4]
    %6 = vst [vmem:[#allocation1] sm:%s4] %v5
    %v7 = vld [vmem:[#allocation1] sm:$0x1]
    %vm8 = vcmask 162816
    %9 = vst.msk [vmem:[#allocation0] sm:$0x1] %vm8, %v7
    %s10 = scalar_lea.vmem [#allocation1], 3
    %v11 = vld [vmem:[%s10] sm:$0x1]
    %12 = vrot.lane.b32.xlu0 %v11, 60
    %v13 = vpop.permute.xlu0 %12
    %vm14 = vcmask 654816
    %15 = vst.msk [vmem:[#allocation0] sm:$0x1] %vm14, %v13
    %s16 = scalar_lea.vmem [#allocation1], 2
    %v17 = vld [vmem:[%s16] sm:$0x1]
    %18 = vrot.lane.b32.xlu0 %v17, 40
    %v19 = vpop.permute.xlu0 %18
    %vm20 = vcmask 490816
    %21 = vst.msk [vmem:[#allocation0] sm:$0x1] %vm20, %v19
    %s22 = scalar_lea.vmem [#allocation1], 1
    %v23 = vld [vmem:[%s22] sm:$0x1]
    %24 = vrot.lane.b32.xlu0 %v23, 20
    %v25 = vpop.permute.xlu0 %24
    %vm26 = vcmask 326816
    %27 = vst.msk [vmem:[#allocation0] sm:$0x1] %vm26, %v25
    %s29 = sshll.u32 1, 1
    %s30 = ssub.s32 %s29, 1
    %v32 = vld [vmem:[#allocation0] sm:%s30]
    %s33 = sshll.u32 1, 1
    %s34 = ssub.s32 %s33, 1
    %35 = vst [vmem:[%s1] sm:%s34] %v32

// kernel: tile.13
$region0: #{tile.13}
  #allocation0 [shape = 's32[1]{0}', space=sflag, size = 0x4, scoped, tag = 'scoped memory for tile.13']
  %s0 = inlined_call_operand.vmem [shape: f32[10], index: 0, kind: input, shape index: {}]
  %s1 = inlined_call_operand.vmem [shape: f32[12,10], index: 1, kind: output, shape index: {}]
  // Predicated region
  $region2: #{tile.13} parent=0 // pred_check
    _
  $region3: #{tile.13} parent=0 // pred_check_branch
    %3 = sbr.rel (0) target = $region5
  $region4: #{tile.13} parent=0 // pred_region
    _
  $region5: #{tile.13} parent=0 // pred_fallthru
    _
  %v4 = vld [vmem:[%s0] ss:$0 sm:$0xff]
  %5 = vst [vmem:[%s1] sm:$0xff] %v4
  %s6 = scalar_lea.vmem %s1, 8
  %7 = vst [vmem:[%s6] sm:$0xff] %v4

// kernel: tile.14
$region0: #{tile.14}
  %s0 = inlined_call_operand.vmem [shape: f32[12,10], index: 0, kind: input, shape index: {}]
  %s1 = inlined_call_operand.vmem [shape: f32[120], index: 1, kind: output, shape index: {}]
  $region1: #{tile.14} parent=0
    #allocation0 [shape = 'u8[4096]{0}', space=vmem, size = 0x1000, scoped, tag = 'scoped mem for output reshape']
    %v2 = vld [vmem:[%s0] sm:$0x1]
    %vm3 = vcmask 80896
    %4 = vst.msk [vmem:[#allocation0] sm:$0x1] %vm3, %v2
    %s5 = scalar_lea.vmem %s0, 11
    %v6 = vld [vmem:[%s5] sm:$0x1]
    %7 = vrot.lane.b32.xlu0 %v6, 110
    %v8 = vpop.permute.xlu0 %7
    %vm9 = vcmask 982896
    %10 = vst.msk [vmem:[#allocation0] sm:$0x1] %vm9, %v8
    %s11 = scalar_lea.vmem %s0, 10
    %v12 = vld [vmem:[%s11] sm:$0x1]
    %13 = vrot.lane.b32.xlu0 %v12, 100
    %v14 = vpop.permute.xlu0 %13
    %vm15 = vcmask 900896
    %16 = vst.msk [vmem:[#allocation0] sm:$0x1] %vm15, %v14
    %s17 = scalar_lea.vmem %s0, 9
    %v18 = vld [vmem:[%s17] sm:$0x1]
    %19 = vrot.lane.b32.xlu0 %v18, 90
    %v20 = vpop.permute.xlu0 %19
    %vm21 = vcmask 818896
    %22 = vst.msk [vmem:[#allocation0] sm:$0x1] %vm21, %v20
    %s23 = scalar_lea.vmem %s0, 8
    %v24 = vld [vmem:[%s23] sm:$0x1]
    %25 = vrot.lane.b32.xlu0 %v24, 80
    %v26 = vpop.permute.xlu0 %25
    %vm27 = vcmask 736896
    %28 = vst.msk [vmem:[#allocation0] sm:$0x1] %vm27, %v26
    %s29 = scalar_lea.vmem %s0, 7
    %v30 = vld [vmem:[%s29] sm:$0x1]
    %31 = vrot.lane.b32.xlu0 %v30, 70
    %v32 = vpop.permute.xlu0 %31
    %vm33 = vcmask 654896
    %34 = vst.msk [vmem:[#allocation0] sm:$0x1] %vm33, %v32
    %s35 = scalar_lea.vmem %s0, 6
    %v36 = vld [vmem:[%s35] sm:$0x1]
    %37 = vrot.lane.b32.xlu0 %v36, 60
    %v38 = vpop.permute.xlu0 %37
    %vm39 = vcmask 572896
    %40 = vst.msk [vmem:[#allocation0] sm:$0x1] %vm39, %v38
    %s41 = scalar_lea.vmem %s0, 5
    %v42 = vld [vmem:[%s41] sm:$0x1]
    %43 = vrot.lane.b32.xlu0 %v42, 50
    %v44 = vpop.permute.xlu0 %43
    %vm45 = vcmask 490896
    %46 = vst.msk [vmem:[#allocation0] sm:$0x1] %vm45, %v44
    %s47 = scalar_lea.vmem %s0, 4
    %v48 = vld [vmem:[%s47] sm:$0x1]
    %49 = vrot.lane.b32.xlu0 %v48, 40
    %v50 = vpop.permute.xlu0 %49
    %vm51 = vcmask 408896
    %52 = vst.msk [vmem:[#allocation0] sm:$0x1] %vm51, %v50
    %s53 = scalar_lea.vmem %s0, 3
    %v54 = vld [vmem:[%s53] sm:$0x1]
    %55 = vrot.lane.b32.xlu0 %v54, 30
    %v56 = vpop.permute.xlu0 %55
    %vm57 = vcmask 326896
    %58 = vst.msk [vmem:[#allocation0] sm:$0x1] %vm57, %v56
    %s59 = scalar_lea.vmem %s0, 2
    %v60 = vld [vmem:[%s59] sm:$0x1]
    %61 = vrot.lane.b32.xlu0 %v60, 20
    %v62 = vpop.permute.xlu0 %61
    %vm63 = vcmask 244896
    %64 = vst.msk [vmem:[#allocation0] sm:$0x1] %vm63, %v62
    %s65 = scalar_lea.vmem %s0, 1
    %v66 = vld [vmem:[%s65] sm:$0x1]
    %67 = vrot.lane.b32.xlu0 %v66, 10
    %v68 = vpop.permute.xlu0 %67
    %vm69 = vcmask 162896
    %70 = vst.msk [vmem:[#allocation0] sm:$0x1] %vm69, %v68
    %s72 = sshll.u32 1, 1
    %s73 = ssub.s32 %s72, 1
    %v75 = vld [vmem:[#allocation0] sm:%s73]
    %s76 = sshll.u32 1, 1
    %s77 = ssub.s32 %s76, 1
    %78 = vst [vmem:[%s1] sm:%s77] %v75

// kernel: net_forward.1
$region0: #{net_forward.1}
  #allocation0 [shape = 'u32[]', space=smem, size = 0x4, offset = 0x4, fixed_abs, tag = 'smem constant byte address 0x4 - core index']
  #allocation1 [shape = 'u32[144,128]{1,0:T(1,128)}', space=vmem, size = 0x12000, scoped, tag = 'internal scratch']
  %s0 = inlined_call_operand.vmem [shape: f32[28,8,28], index: 0, kind: input, shape index: {}]
  %s1 = inlined_call_operand.vmem [shape: bf16[140,256], index: 1, kind: input, shape index: {}]
  %s2 = inlined_call_operand.vmem [shape: bf16[5,128,256], index: 2, kind: input, shape index: {}]
  %s3 = inlined_call_operand.vmem [shape: bf16[4,128,128], index: 3, kind: input, shape index: {}]
  %s4 = inlined_call_operand.vmem [shape: f32[1,128], index: 4, kind: input, shape index: {}]
  %s5 = inlined_call_operand.vmem [shape: f32[1,128], index: 5, kind: input, shape index: {}]
  %s6 = inlined_call_operand.vmem [shape: f32[1,128], index: 6, kind: input, shape index: {}]
  %s7 = inlined_call_operand.vmem [shape: f32[8,128], index: 7, kind: output, shape index: {}]
  %s8 = sld [smem:[#allocation0]]
  $region38: #{net_forward.1} parent=0
    _
  %s10 = ssub.s32 1, %s8
  %s11 = scalar_select 0, %s10, %s8
  // Predicated region
  $region2: #{net_forward.1} parent=0 // pred_check
    _
  $region3: #{net_forward.1} parent=0 // pred_check_branch
    %13 = sbr.rel (0) target = $region5
  $region4: #{net_forward.1} parent=0 // pred_region
    _
  $region5: #{net_forward.1} parent=0 // pred_fallthru
    _
  // Predicated region
  $region6: #{net_forward.1} parent=0 // pred_check
    _
  $region7: #{net_forward.1} parent=0 // pred_check_branch
    %15 = sbr.rel (0) target = $region9
  $region8: #{net_forward.1} parent=0 // pred_region
    _
  $region9: #{net_forward.1} parent=0 // pred_fallthru
    _
  // Predicated region
  $region10: #{net_forward.1} parent=0 // pred_check
    _
  $region11: #{net_forward.1} parent=0 // pred_check_branch
    %17 = sbr.rel (0) target = $region13
  $region12: #{net_forward.1} parent=0 // pred_region
    _
  $region13: #{net_forward.1} parent=0 // pred_fallthru
    _
  // Predicated region
  $region14: #{net_forward.1} parent=0 // pred_check
    _
  $region15: #{net_forward.1} parent=0 // pred_check_branch
    %19 = sbr.rel (0) target = $region17
  $region16: #{net_forward.1} parent=0 // pred_region
    _
  $region17: #{net_forward.1} parent=0 // pred_fallthru
    _
  // Predicated region
  $region18: #{net_forward.1} parent=0 // pred_check
    _
  $region19: #{net_forward.1} parent=0 // pred_check_branch
    %21 = sbr.rel (0) target = $region21
  $region20: #{net_forward.1} parent=0 // pred_region
    _
  $region21: #{net_forward.1} parent=0 // pred_fallthru
    _
  // Predicated region
  $region22: #{net_forward.1} parent=0 // pred_check
    _
  $region23: #{net_forward.1} parent=0 // pred_check_branch
    %23 = sbr.rel (0) target = $region25
  $region24: #{net_forward.1} parent=0 // pred_region
    _
  $region25: #{net_forward.1} parent=0 // pred_fallthru
    _
  // Predicated region
  $region26: #{net_forward.1} parent=0 // pred_check
    _
  $region27: #{net_forward.1} parent=0 // pred_check_branch
    %25 = sbr.rel (0) target = $region29
  $region28: #{net_forward.1} parent=0 // pred_region
    _
  $region29: #{net_forward.1} parent=0 // pred_fallthru
    _
  %v27 = vld [vmem:[%s0] sm:$0xff]
  %v28 = vld [vmem:[%s0 + $0x8] sm:$0xff]
  %v29 = vld [vmem:[%s0 + $0x10] sm:$0xff]
  %v30 = vld [vmem:[%s0 + $0x18] sm:$0xff]
  %v31 = vld [vmem:[%s0 + $0x20] sm:$0xff]
  %v32 = vld [vmem:[%s0 + $0x28] sm:$0xff]
  %v33 = vld [vmem:[%s0 + $0x30] sm:$0xff]
  %v34 = vld [vmem:[%s0 + $0x38] sm:$0xff]
  %v35 = vld [vmem:[%s0 + $0x40] sm:$0xff]
  %v36 = vld [vmem:[%s0 + $0x48] sm:$0xff]
  %v37 = vld [vmem:[%s0 + $0x50] sm:$0xff]
  %v38 = vld [vmem:[%s0 + $0x58] sm:$0xff]
  %v39 = vld [vmem:[%s0 + $0x60] sm:$0xff]
  %v40 = vld [vmem:[%s0 + $0x68] sm:$0xff]
  %v41 = vld [vmem:[%s0 + $0x70] sm:$0xff]
  %v42 = vld [vmem:[%s0 + $0x78] sm:$0xff]
  %v43 = vld [vmem:[%s0 + $0x80] sm:$0xff]
  %v44 = vld [vmem:[%s0 + $0x88] sm:$0xff]
  %v45 = vld [vmem:[%s0 + $0x90] sm:$0xff]
  %v46 = vld [vmem:[%s0 + $0x98] sm:$0xff]
  %v47 = vld [vmem:[%s0 + $0xa0] sm:$0xff]
  %v48 = vld [vmem:[%s0 + $0xa8] sm:$0xff]
  %v49 = vld [vmem:[%s0 + $0xb0] sm:$0xff]
  %v50 = vld [vmem:[%s0 + $0xb8] sm:$0xff]
  %v51 = vld [vmem:[%s0 + $0xc0] sm:$0xff]
  %v52 = vld [vmem:[%s0 + $0xc8] sm:$0xff]
  %v53 = vld [vmem:[%s0 + $0xd0] sm:$0xff]
  %v54 = vld [vmem:[%s0 + $0xd8] sm:$0xff]
  %79 = vrot.lane.b32.xlu0 %v28, 28
  %v80 = vpop.permute.xlu0 %79
  %81 = vrot.lane.b32.xlu0 %v29, 28
  %v82 = vpop.permute.xlu0 %81
  %83 = vrot.lane.b32.xlu0 %v30, 28
  %v84 = vpop.permute.xlu0 %83
  %85 = vrot.lane.b32.xlu0 %v31, 28
  %v86 = vpop.permute.xlu0 %85
  %87 = vrot.lane.b32.xlu0 %v32, 28
  %v88 = vpop.permute.xlu0 %87
  %89 = vrot.lane.b32.xlu0 %v33, 28
  %v90 = vpop.permute.xlu0 %89
  %91 = vrot.lane.b32.xlu0 %v34, 28
  %v92 = vpop.permute.xlu0 %91
  %93 = vrot.lane.b32.xlu0 %v35, 28
  %v94 = vpop.permute.xlu0 %93
  %95 = vrot.lane.b32.xlu0 %v36, 28
  %v96 = vpop.permute.xlu0 %95
  %97 = vrot.lane.b32.xlu0 %v37, 28
  %v98 = vpop.permute.xlu0 %97
  %99 = vrot.lane.b32.xlu0 %v38, 28
  %v100 = vpop.permute.xlu0 %99
  %101 = vrot.lane.b32.xlu0 %v39, 28
  %v102 = vpop.permute.xlu0 %101
  %103 = vrot.lane.b32.xlu0 %v40, 28
  %v104 = vpop.permute.xlu0 %103
  %105 = vrot.lane.b32.xlu0 %v41, 28
  %v106 = vpop.permute.xlu0 %105
  %107 = vrot.lane.b32.xlu0 %v42, 28
  %v108 = vpop.permute.xlu0 %107
  %109 = vrot.lane.b32.xlu0 %v43, 28
  %v110 = vpop.permute.xlu0 %109
  %111 = vrot.lane.b32.xlu0 %v44, 28
  %v112 = vpop.permute.xlu0 %111
  %113 = vrot.lane.b32.xlu0 %v45, 28
  %v114 = vpop.permute.xlu0 %113
  %115 = vrot.lane.b32.xlu0 %v46, 28
  %v116 = vpop.permute.xlu0 %115
  %117 = vrot.lane.b32.xlu0 %v47, 28
  %v118 = vpop.permute.xlu0 %117
  %119 = vrot.lane.b32.xlu0 %v48, 28
  %v120 = vpop.permute.xlu0 %119
  %121 = vrot.lane.b32.xlu0 %v49, 28
  %v122 = vpop.permute.xlu0 %121
  %123 = vrot.lane.b32.xlu0 %v50, 28
  %v124 = vpop.permute.xlu0 %123
  %125 = vrot.lane.b32.xlu0 %v51, 28
  %v126 = vpop.permute.xlu0 %125
  %152 = vrot.lane.b32.xlu0 %v29, 56
  %v153 = vpop.permute.xlu0 %152
  %154 = vrot.lane.b32.xlu0 %v30, 56
  %v155 = vpop.permute.xlu0 %154
  %156 = vrot.lane.b32.xlu0 %v31, 56
  %v157 = vpop.permute.xlu0 %156
  %158 = vrot.lane.b32.xlu0 %v32, 56
  %v159 = vpop.permute.xlu0 %158
  %160 = vrot.lane.b32.xlu0 %v33, 56
  %v161 = vpop.permute.xlu0 %160
  %162 = vrot.lane.b32.xlu0 %v34, 56
  %v163 = vpop.permute.xlu0 %162
  %164 = vrot.lane.b32.xlu0 %v35, 56
  %v165 = vpop.permute.xlu0 %164
  %166 = vrot.lane.b32.xlu0 %v36, 56
  %v167 = vpop.permute.xlu0 %166
  %168 = vrot.lane.b32.xlu0 %v37, 56
  %v169 = vpop.permute.xlu0 %168
  %170 = vrot.lane.b32.xlu0 %v38, 56
  %v171 = vpop.permute.xlu0 %170
  %172 = vrot.lane.b32.xlu0 %v39, 56
  %v173 = vpop.permute.xlu0 %172
  %174 = vrot.lane.b32.xlu0 %v40, 56
  %v175 = vpop.permute.xlu0 %174
  %176 = vrot.lane.b32.xlu0 %v41, 56
  %v177 = vpop.permute.xlu0 %176
  %178 = vrot.lane.b32.xlu0 %v42, 56
  %v179 = vpop.permute.xlu0 %178
  %180 = vrot.lane.b32.xlu0 %v43, 56
  %v181 = vpop.permute.xlu0 %180
  %182 = vrot.lane.b32.xlu0 %v44, 56
  %v183 = vpop.permute.xlu0 %182
  %184 = vrot.lane.b32.xlu0 %v45, 56
  %v185 = vpop.permute.xlu0 %184
  %186 = vrot.lane.b32.xlu0 %v46, 56
  %v187 = vpop.permute.xlu0 %186
  %188 = vrot.lane.b32.xlu0 %v47, 56
  %v189 = vpop.permute.xlu0 %188
  %190 = vrot.lane.b32.xlu0 %v48, 56
  %v191 = vpop.permute.xlu0 %190
  %192 = vrot.lane.b32.xlu0 %v49, 56
  %v193 = vpop.permute.xlu0 %192
  %194 = vrot.lane.b32.xlu0 %v50, 56
  %v195 = vpop.permute.xlu0 %194
  %196 = vrot.lane.b32.xlu0 %v51, 56
  %v197 = vpop.permute.xlu0 %196
  %198 = vrot.lane.b32.xlu0 %v52, 56
  %v199 = vpop.permute.xlu0 %198
  %225 = vrot.lane.b32.xlu0 %v30, 84
  %v226 = vpop.permute.xlu0 %225
  %227 = vrot.lane.b32.xlu0 %v31, 84
  %v228 = vpop.permute.xlu0 %227
  %229 = vrot.lane.b32.xlu0 %v32, 84
  %v230 = vpop.permute.xlu0 %229
  %231 = vrot.lane.b32.xlu0 %v33, 84
  %v232 = vpop.permute.xlu0 %231
  %233 = vrot.lane.b32.xlu0 %v34, 84
  %v234 = vpop.permute.xlu0 %233
  %235 = vrot.lane.b32.xlu0 %v35, 84
  %v236 = vpop.permute.xlu0 %235
  %237 = vrot.lane.b32.xlu0 %v36, 84
  %v238 = vpop.permute.xlu0 %237
  %239 = vrot.lane.b32.xlu0 %v37, 84
  %v240 = vpop.permute.xlu0 %239
  %241 = vrot.lane.b32.xlu0 %v38, 84
  %v242 = vpop.permute.xlu0 %241
  %243 = vrot.lane.b32.xlu0 %v39, 84
  %v244 = vpop.permute.xlu0 %243
  %245 = vrot.lane.b32.xlu0 %v40, 84
  %v246 = vpop.permute.xlu0 %245
  %247 = vrot.lane.b32.xlu0 %v41, 84
  %v248 = vpop.permute.xlu0 %247
  %249 = vrot.lane.b32.xlu0 %v42, 84
  %v250 = vpop.permute.xlu0 %249
  %251 = vrot.lane.b32.xlu0 %v43, 84
  %v252 = vpop.permute.xlu0 %251
  %253 = vrot.lane.b32.xlu0 %v44, 84
  %v254 = vpop.permute.xlu0 %253
  %255 = vrot.lane.b32.xlu0 %v45, 84
  %v256 = vpop.permute.xlu0 %255
  %257 = vrot.lane.b32.xlu0 %v46, 84
  %v258 = vpop.permute.xlu0 %257
  %259 = vrot.lane.b32.xlu0 %v47, 84
  %v260 = vpop.permute.xlu0 %259
  %261 = vrot.lane.b32.xlu0 %v48, 84
  %v262 = vpop.permute.xlu0 %261
  %263 = vrot.lane.b32.xlu0 %v49, 84
  %v264 = vpop.permute.xlu0 %263
  %265 = vrot.lane.b32.xlu0 %v50, 84
  %v266 = vpop.permute.xlu0 %265
  %267 = vrot.lane.b32.xlu0 %v51, 84
  %v268 = vpop.permute.xlu0 %267
  %269 = vrot.lane.b32.xlu0 %v52, 84
  %v270 = vpop.permute.xlu0 %269
  %271 = vrot.lane.b32.xlu0 %v53, 84
  %v272 = vpop.permute.xlu0 %271
  %298 = vrot.lane.b32.xlu0 %v31, 112
  %v299 = vpop.permute.xlu0 %298
  %300 = vrot.lane.b32.xlu0 %v32, 112
  %v301 = vpop.permute.xlu0 %300
  %302 = vrot.lane.b32.xlu0 %v33, 112
  %v303 = vpop.permute.xlu0 %302
  %304 = vrot.lane.b32.xlu0 %v34, 112
  %v305 = vpop.permute.xlu0 %304
  %306 = vrot.lane.b32.xlu0 %v35, 112
  %v307 = vpop.permute.xlu0 %306
  %308 = vrot.lane.b32.xlu0 %v36, 112
  %v309 = vpop.permute.xlu0 %308
  %310 = vrot.lane.b32.xlu0 %v37, 112
  %v311 = vpop.permute.xlu0 %310
  %312 = vrot.lane.b32.xlu0 %v38, 112
  %v313 = vpop.permute.xlu0 %312
  %314 = vrot.lane.b32.xlu0 %v39, 112
  %v315 = vpop.permute.xlu0 %314
  %316 = vrot.lane.b32.xlu0 %v40, 112
  %v317 = vpop.permute.xlu0 %316
  %318 = vrot.lane.b32.xlu0 %v41, 112
  %v319 = vpop.permute.xlu0 %318
  %320 = vrot.lane.b32.xlu0 %v42, 112
  %v321 = vpop.permute.xlu0 %320
  %322 = vrot.lane.b32.xlu0 %v43, 112
  %v323 = vpop.permute.xlu0 %322
  %324 = vrot.lane.b32.xlu0 %v44, 112
  %v325 = vpop.permute.xlu0 %324
  %326 = vrot.lane.b32.xlu0 %v45, 112
  %v327 = vpop.permute.xlu0 %326
  %328 = vrot.lane.b32.xlu0 %v46, 112
  %v329 = vpop.permute.xlu0 %328
  %330 = vrot.lane.b32.xlu0 %v47, 112
  %v331 = vpop.permute.xlu0 %330
  %332 = vrot.lane.b32.xlu0 %v48, 112
  %v333 = vpop.permute.xlu0 %332
  %334 = vrot.lane.b32.xlu0 %v49, 112
  %v335 = vpop.permute.xlu0 %334
  %336 = vrot.lane.b32.xlu0 %v50, 112
  %v337 = vpop.permute.xlu0 %336
  %338 = vrot.lane.b32.xlu0 %v51, 112
  %v339 = vpop.permute.xlu0 %338
  %340 = vrot.lane.b32.xlu0 %v52, 112
  %v341 = vpop.permute.xlu0 %340
  %342 = vrot.lane.b32.xlu0 %v53, 112
  %v343 = vpop.permute.xlu0 %342
  %344 = vrot.lane.b32.xlu0 %v54, 112
  %v345 = vpop.permute.xlu0 %344
  %vm370 = vcmask 228352
  %v371 = vsel %vm370, %v27, %v80
  %v372 = vsel %vm370, %v28, %v82
  %v373 = vsel %vm370, %v29, %v84
  %v374 = vsel %vm370, %v30, %v86
  %v375 = vsel %vm370, %v31, %v88
  %v376 = vsel %vm370, %v32, %v90
  %v377 = vsel %vm370, %v33, %v92
  %v378 = vsel %vm370, %v34, %v94
  %v379 = vsel %vm370, %v35, %v96
  %v380 = vsel %vm370, %v36, %v98
  %v381 = vsel %vm370, %v37, %v100
  %v382 = vsel %vm370, %v38, %v102
  %v383 = vsel %vm370, %v39, %v104
  %v384 = vsel %vm370, %v40, %v106
  %v385 = vsel %vm370, %v41, %v108
  %v386 = vsel %vm370, %v42, %v110
  %v387 = vsel %vm370, %v43, %v112
  %v388 = vsel %vm370, %v44, %v114
  %v389 = vsel %vm370, %v45, %v116
  %v390 = vsel %vm370, %v46, %v118
  %v391 = vsel %vm370, %v47, %v120
  %v392 = vsel %vm370, %v48, %v122
  %v393 = vsel %vm370, %v49, %v124
  %v394 = vsel %vm370, %v50, %v126
  %vm395 = vcmask 457728
  %v396 = vsel %vm395, %v371, %v153
  %v397 = vsel %vm395, %v372, %v155
  %v398 = vsel %vm395, %v373, %v157
  %v399 = vsel %vm395, %v374, %v159
  %v400 = vsel %vm395, %v375, %v161
  %v401 = vsel %vm395, %v376, %v163
  %v402 = vsel %vm395, %v377, %v165
  %v403 = vsel %vm395, %v378, %v167
  %v404 = vsel %vm395, %v379, %v169
  %v405 = vsel %vm395, %v380, %v171
  %v406 = vsel %vm395, %v381, %v173
  %v407 = vsel %vm395, %v382, %v175
  %v408 = vsel %vm395, %v383, %v177
  %v409 = vsel %vm395, %v384, %v179
  %v410 = vsel %vm395, %v385, %v181
  %v411 = vsel %vm395, %v386, %v183
  %v412 = vsel %vm395, %v387, %v185
  %v413 = vsel %vm395, %v388, %v187
  %v414 = vsel %vm395, %v389, %v189
  %v415 = vsel %vm395, %v390, %v191
  %v416 = vsel %vm395, %v391, %v193
  %v417 = vsel %vm395, %v392, %v195
  %v418 = vsel %vm395, %v393, %v197
  %v419 = vsel %vm395, %v394, %v199
  %vm420 = vcmask 687104
  %v421 = vsel %vm420, %v396, %v226
  %v422 = vsel %vm420, %v397, %v228
  %v423 = vsel %vm420, %v398, %v230
  %v424 = vsel %vm420, %v399, %v232
  %v425 = vsel %vm420, %v400, %v234
  %v426 = vsel %vm420, %v401, %v236
  %v427 = vsel %vm420, %v402, %v238
  %v428 = vsel %vm420, %v403, %v240
  %v429 = vsel %vm420, %v404, %v242
  %v430 = vsel %vm420, %v405, %v244
  %v431 = vsel %vm420, %v406, %v246
  %v432 = vsel %vm420, %v407, %v248
  %v433 = vsel %vm420, %v408, %v250
  %v434 = vsel %vm420, %v409, %v252
  %v435 = vsel %vm420, %v410, %v254
  %v436 = vsel %vm420, %v411, %v256
  %v437 = vsel %vm420, %v412, %v258
  %v438 = vsel %vm420, %v413, %v260
  %v439 = vsel %vm420, %v414, %v262
  %v440 = vsel %vm420, %v415, %v264
  %v441 = vsel %vm420, %v416, %v266
  %v442 = vsel %vm420, %v417, %v268
  %v443 = vsel %vm420, %v418, %v270
  %v444 = vsel %vm420, %v419, %v272
  %vm445 = vcmask 916480
  %v446 = vsel %vm445, %v421, %v299
  %v447 = vsel %vm445, %v422, %v301
  %v448 = vsel %vm445, %v423, %v303
  %v449 = vsel %vm445, %v424, %v305
  %v450 = vsel %vm445, %v425, %v307
  %v451 = vsel %vm445, %v426, %v309
  %v452 = vsel %vm445, %v427, %v311
  %v453 = vsel %vm445, %v428, %v313
  %v454 = vsel %vm445, %v429, %v315
  %v455 = vsel %vm445, %v430, %v317
  %v456 = vsel %vm445, %v431, %v319
  %v457 = vsel %vm445, %v432, %v321
  %v458 = vsel %vm445, %v433, %v323
  %v459 = vsel %vm445, %v434, %v325
  %v460 = vsel %vm445, %v435, %v327
  %v461 = vsel %vm445, %v436, %v329
  %v462 = vsel %vm445, %v437, %v331
  %v463 = vsel %vm445, %v438, %v333
  %v464 = vsel %vm445, %v439, %v335
  %v465 = vsel %vm445, %v440, %v337
  %v466 = vsel %vm445, %v441, %v339
  %v467 = vsel %vm445, %v442, %v341
  %v468 = vsel %vm445, %v443, %v343
  %v469 = vsel %vm445, %v444, %v345
  %v470 = vpack.c.bf16 %v447, %v446
  %v471 = vpack.c.bf16 %v301, %v299
  %v472 = vpack.c.bf16 %v449, %v448
  %v473 = vpack.c.bf16 %v305, %v303
  %v474 = vpack.c.bf16 %v451, %v450
  %v475 = vpack.c.bf16 %v309, %v307
  %v476 = vpack.c.bf16 %v453, %v452
  %v477 = vpack.c.bf16 %v313, %v311
  %v478 = vpack.c.bf16 %v455, %v454
  %v479 = vpack.c.bf16 %v317, %v315
  %v480 = vpack.c.bf16 %v457, %v456
  %v481 = vpack.c.bf16 %v321, %v319
  %v482 = vpack.c.bf16 %v459, %v458
  %v483 = vpack.c.bf16 %v325, %v323
  %v484 = vpack.c.bf16 %v461, %v460
  %v485 = vpack.c.bf16 %v329, %v327
  %v486 = vpack.c.bf16 %v463, %v462
  %v487 = vpack.c.bf16 %v333, %v331
  %v488 = vpack.c.bf16 %v465, %v464
  %v489 = vpack.c.bf16 %v337, %v335
  %v490 = vpack.c.bf16 %v467, %v466
  %v491 = vpack.c.bf16 %v341, %v339
  %v492 = vpack.c.bf16 %v469, %v468
  %v493 = vpack.c.bf16 %v345, %v343
  %v494 = vld [vmem:[%s1] sm:$0xff]
  %v495 = vld [vmem:[%s1 + $0x8] sm:$0xff]
  %v496 = vld [vmem:[%s1 + $0x10] sm:$0xff]
  %v497 = vld [vmem:[%s1 + $0x18] sm:$0xff]
  %v498 = vld [vmem:[%s1 + $0x20] sm:$0xff]
  %v499 = vld [vmem:[%s1 + $0x28] sm:$0xff]
  %v500 = vld [vmem:[%s1 + $0x30] sm:$0xff]
  %v501 = vld [vmem:[%s1 + $0x38] sm:$0xff]
  %v502 = vld [vmem:[%s1 + $0x40] sm:$0xff]
  %v503 = vld [vmem:[%s1 + $0x48] sm:$0xff]
  %v504 = vld [vmem:[%s1 + $0x50] sm:$0xff]
  %v505 = vld [vmem:[%s1 + $0x58] sm:$0xff]
  %v506 = vld [vmem:[%s1 + $0x60] sm:$0xff]
  %v507 = vld [vmem:[%s1 + $0x68] sm:$0xff]
  %v508 = vld [vmem:[%s1 + $0x70] sm:$0xff]
  %v509 = vld [vmem:[%s1 + $0x78] sm:$0xff]
  %v510 = vld [vmem:[%s1 + $0x80] sm:$0xff]
  %v511 = vld [vmem:[%s1 + $0x88] sm:$0x33]
  %v530 = vunpack.c.l.b16 %v494
  %v531 = vunpack.c.h.b16 %v494
  %v532 = vunpack.c.l.b16 %v495
  %v533 = vunpack.c.h.b16 %v495
  %v534 = vunpack.c.l.b16 %v496
  %v535 = vunpack.c.h.b16 %v496
  %v536 = vunpack.c.l.b16 %v497
  %v537 = vunpack.c.h.b16 %v497
  %v538 = vunpack.c.l.b16 %v498
  %v539 = vunpack.c.h.b16 %v498
  %v540 = vunpack.c.l.b16 %v499
  %v541 = vunpack.c.h.b16 %v499
  %v542 = vunpack.c.l.b16 %v500
  %v543 = vunpack.c.h.b16 %v500
  %v544 = vunpack.c.l.b16 %v501
  %v545 = vunpack.c.h.b16 %v501
  %v546 = vunpack.c.l.b16 %v502
  %v547 = vunpack.c.h.b16 %v502
  %v548 = vunpack.c.l.b16 %v503
  %v549 = vunpack.c.h.b16 %v503
  %v550 = vunpack.c.l.b16 %v504
  %v551 = vunpack.c.h.b16 %v504
  %v552 = vunpack.c.l.b16 %v505
  %v553 = vunpack.c.h.b16 %v505
  %v554 = vunpack.c.l.b16 %v506
  %v555 = vunpack.c.h.b16 %v506
  %v556 = vunpack.c.l.b16 %v507
  %v557 = vunpack.c.h.b16 %v507
  %v558 = vunpack.c.l.b16 %v508
  %v559 = vunpack.c.h.b16 %v508
  %v560 = vunpack.c.l.b16 %v509
  %v561 = vunpack.c.h.b16 %v509
  %v562 = vunpack.c.l.b16 %v510
  %v563 = vunpack.c.h.b16 %v510
  %v564 = vunpack.c.l.b16 %v511
  %v565 = vunpack.c.h.b16 %v511
  %v566 = vpack.c.b16 %v532, %v530
  %v567 = vpack.c.b16 %v533, %v531
  %v568 = vpack.c.b16 %v536, %v534
  %v569 = vpack.c.b16 %v537, %v535
  %v570 = vpack.c.b16 %v540, %v538
  %v571 = vpack.c.b16 %v541, %v539
  %v572 = vpack.c.b16 %v544, %v542
  %v573 = vpack.c.b16 %v545, %v543
  %v574 = vpack.c.b16 %v548, %v546
  %v575 = vpack.c.b16 %v549, %v547
  %v576 = vpack.c.b16 %v552, %v550
  %v577 = vpack.c.b16 %v553, %v551
  %v578 = vpack.c.b16 %v556, %v554
  %v579 = vpack.c.b16 %v557, %v555
  %v580 = vpack.c.b16 %v560, %v558
  %v581 = vpack.c.b16 %v561, %v559
  %v582 = vpack.c.b16 %v564, %v562
  %v583 = vpack.c.b16 %v565, %v563
  %vm600 = vcmask 97280
  %v602 = vsel %vm600, %v471, 0
  %v605 = vsel %vm600, %v473, 0
  %v608 = vsel %vm600, %v475, 0
  %v611 = vsel %vm600, %v477, 0
  %v614 = vsel %vm600, %v479, 0
  %v617 = vsel %vm600, %v481, 0
  %v620 = vsel %vm600, %v483, 0
  %v623 = vsel %vm600, %v485, 0
  %v626 = vsel %vm600, %v487, 0
  %v629 = vsel %vm600, %v489, 0
  %v632 = vsel %vm600, %v491, 0
  %v635 = vsel %vm600, %v493, 0
  %vm637 = vcmask 1045504
  %v639 = vsel %vm637, %v582, 0
  %v642 = vsel %vm637, %v583, 0
  %644 = vmatprep.subr.bf16.mxu0 %v581
  %645 = vmatpush1.bf16.msra.mxu0 %v580
  %646 = vmatprep.subr.bf16.mxu0 %v579
  %647 = vmatpush1.bf16.msra.mxu0 %v578
  %648 = vmatprep.subr.bf16.mxu0 %v577
  %649 = vmatpush1.bf16.msra.mxu0 %v576
  %650 = vmatprep.subr.bf16.mxu0 %v575
  %651 = vmatpush1.bf16.msra.mxu0 %v574
  %652 = vmatprep.subr.bf16.mxu0 %v573
  %653 = vmatpush1.bf16.msra.mxu0 %v572
  %654 = vmatprep.subr.bf16.mxu0 %v571
  %655 = vmatpush1.bf16.msra.mxu0 %v570
  %656 = vmatprep.subr.bf16.mxu0 %v569
  %657 = vmatpush1.bf16.msra.mxu0 %v568
  %658 = vmatprep.subr.bf16.mxu0 %v567
  %659 = vmatpush1.bf16.msra.mxu0 %v566
  %660 = vmatprep.subr.bf16.mxu0 0
  %661 = vmatpush2.bf16.msra.mxu0 0
  %662 = vmatprep.subr.bf16.mxu0 0
  %663 = vmatpush2.bf16.msra.mxu0 0
  %664 = vmatprep.subr.bf16.mxu0 0
  %665 = vmatpush2.bf16.msra.mxu0 0
  %666 = vmatprep.subr.bf16.mxu0 0
  %667 = vmatpush2.bf16.msra.mxu0 0
  %668 = vmatprep.subr.bf16.mxu0 0
  %669 = vmatpush2.bf16.msra.mxu0 0
  %670 = vmatprep.subr.bf16.mxu0 0
  %671 = vmatpush2.bf16.msra.mxu0 0
  %672 = vmatprep.subr.bf16.mxu0 0
  %673 = vmatpush2.bf16.msra.mxu0 0
  %674 = vmatprep.subr.bf16.mxu0 %v642
  %675 = vmatpush2.bf16.msra.mxu0 %v639
  %676 = vmatprep.mubr.bf16.mxu0 %v602
  %677 = vmatmul.mubr.bf16.gmra.mxu0 %v470
  %v678 = vpop.f32.mrf.mxu0
  %v679 = vadd.f32 0.0, %v678
  %v680 = vpop.f32.mrf.mxu0
  %v681 = vadd.f32 0.0, %v680
  %v682 = vpop.f32.mrf.mxu0
  %v683 = vadd.f32 0.0, %v682
  %v684 = vpop.f32.mrf.mxu0
  %v685 = vadd.f32 0.0, %v684
  %686 = vmatprep.mubr.bf16.mxu0 %v605
  %687 = vmatmul.mubr.bf16.gmra.mxu0 %v472
  %v688 = vpop.f32.mrf.mxu0
  %v689 = vadd.f32 0.0, %v688
  %v690 = vpop.f32.mrf.mxu0
  %v691 = vadd.f32 0.0, %v690
  %v692 = vpop.f32.mrf.mxu0
  %v693 = vadd.f32 0.0, %v692
  %v694 = vpop.f32.mrf.mxu0
  %v695 = vadd.f32 0.0, %v694
  %696 = vmatprep.mubr.bf16.mxu0 %v608
  %697 = vmatmul.mubr.bf16.gmra.mxu0 %v474
  %v698 = vpop.f32.mrf.mxu0
  %v699 = vadd.f32 0.0, %v698
  %v700 = vpop.f32.mrf.mxu0
  %v701 = vadd.f32 0.0, %v700
  %v702 = vpop.f32.mrf.mxu0
  %v703 = vadd.f32 0.0, %v702
  %v704 = vpop.f32.mrf.mxu0
  %v705 = vadd.f32 0.0, %v704
  %706 = vmatprep.mubr.bf16.mxu0 %v611
  %707 = vmatmul.mubr.bf16.gmra.mxu0 %v476
  %v708 = vpop.f32.mrf.mxu0
  %v709 = vadd.f32 0.0, %v708
  %v710 = vpop.f32.mrf.mxu0
  %v711 = vadd.f32 0.0, %v710
  %v712 = vpop.f32.mrf.mxu0
  %v713 = vadd.f32 0.0, %v712
  %v714 = vpop.f32.mrf.mxu0
  %v715 = vadd.f32 0.0, %v714
  %716 = vmatprep.mubr.bf16.mxu0 %v614
  %717 = vmatmul.mubr.bf16.gmra.mxu0 %v478
  %v718 = vpop.f32.mrf.mxu0
  %v719 = vadd.f32 0.0, %v718
  %v720 = vpop.f32.mrf.mxu0
  %v721 = vadd.f32 0.0, %v720
  %v722 = vpop.f32.mrf.mxu0
  %v723 = vadd.f32 0.0, %v722
  %v724 = vpop.f32.mrf.mxu0
  %v725 = vadd.f32 0.0, %v724
  %726 = vmatprep.mubr.bf16.mxu0 %v617
  %727 = vmatmul.mubr.bf16.gmra.mxu0 %v480
  %v728 = vpop.f32.mrf.mxu0
  %v729 = vadd.f32 0.0, %v728
  %v730 = vpop.f32.mrf.mxu0
  %v731 = vadd.f32 0.0, %v730
  %v732 = vpop.f32.mrf.mxu0
  %v733 = vadd.f32 0.0, %v732
  %v734 = vpop.f32.mrf.mxu0
  %v735 = vadd.f32 0.0, %v734
  %736 = vmatprep.mubr.bf16.mxu0 %v620
  %737 = vmatmul.mubr.bf16.gmra.mxu0 %v482
  %v738 = vpop.f32.mrf.mxu0
  %v739 = vadd.f32 0.0, %v738
  %v740 = vpop.f32.mrf.mxu0
  %v741 = vadd.f32 0.0, %v740
  %v742 = vpop.f32.mrf.mxu0
  %v743 = vadd.f32 0.0, %v742
  %v744 = vpop.f32.mrf.mxu0
  %v745 = vadd.f32 0.0, %v744
  %746 = vmatprep.mubr.bf16.mxu0 %v623
  %747 = vmatmul.mubr.bf16.gmra.mxu0 %v484
  %v748 = vpop.f32.mrf.mxu0
  %v749 = vadd.f32 0.0, %v748
  %v750 = vpop.f32.mrf.mxu0
  %v751 = vadd.f32 0.0, %v750
  %v752 = vpop.f32.mrf.mxu0
  %v753 = vadd.f32 0.0, %v752
  %v754 = vpop.f32.mrf.mxu0
  %v755 = vadd.f32 0.0, %v754
  %756 = vmatprep.mubr.bf16.mxu0 %v626
  %757 = vmatmul.mubr.bf16.gmra.mxu0 %v486
  %v758 = vpop.f32.mrf.mxu0
  %v759 = vadd.f32 0.0, %v758
  %v760 = vpop.f32.mrf.mxu0
  %v761 = vadd.f32 0.0, %v760
  %v762 = vpop.f32.mrf.mxu0
  %v763 = vadd.f32 0.0, %v762
  %v764 = vpop.f32.mrf.mxu0
  %v765 = vadd.f32 0.0, %v764
  %766 = vmatprep.mubr.bf16.mxu0 %v629
  %767 = vmatmul.mubr.bf16.gmra.mxu0 %v488
  %v768 = vpop.f32.mrf.mxu0
  %v769 = vadd.f32 0.0, %v768
  %v770 = vpop.f32.mrf.mxu0
  %v771 = vadd.f32 0.0, %v770
  %v772 = vpop.f32.mrf.mxu0
  %v773 = vadd.f32 0.0, %v772
  %v774 = vpop.f32.mrf.mxu0
  %v775 = vadd.f32 0.0, %v774
  %776 = vmatprep.mubr.bf16.mxu0 %v632
  %777 = vmatmul.mubr.bf16.gmra.mxu0 %v490
  %v778 = vpop.f32.mrf.mxu0
  %v779 = vadd.f32 0.0, %v778
  %v780 = vpop.f32.mrf.mxu0
  %v781 = vadd.f32 0.0, %v780
  %v782 = vpop.f32.mrf.mxu0
  %v783 = vadd.f32 0.0, %v782
  %v784 = vpop.f32.mrf.mxu0
  %v785 = vadd.f32 0.0, %v784
  %786 = vmatprep.mubr.bf16.mxu0 %v635
  %787 = vmatmul.mubr.bf16.gmra.mxu0 %v492
  %v788 = vpop.f32.mrf.mxu0
  %v789 = vadd.f32 0.0, %v788
  %v790 = vpop.f32.mrf.mxu0
  %v791 = vadd.f32 0.0, %v790
  %v792 = vpop.f32.mrf.mxu0
  %v793 = vadd.f32 0.0, %v792
  %v794 = vpop.f32.mrf.mxu0
  %v795 = vadd.f32 0.0, %v794
  %796 = vdwg.mxu0
  %v797 = vmax.f32 %v679, %v681
  %v798 = vmax.f32 %v683, %v685
  %v799 = vmax.f32 %v689, %v691
  %v800 = vmax.f32 %v693, %v695
  %v801 = vmax.f32 %v699, %v701
  %v802 = vmax.f32 %v703, %v705
  %v803 = vmax.f32 %v709, %v711
  %v804 = vmax.f32 %v713, %v715
  %v805 = vmax.f32 %v719, %v721
  %v806 = vmax.f32 %v723, %v725
  %v807 = vmax.f32 %v729, %v731
  %v808 = vmax.f32 %v733, %v735
  %v809 = vmax.f32 %v739, %v741
  %v810 = vmax.f32 %v743, %v745
  %v811 = vmax.f32 %v749, %v751
  %v812 = vmax.f32 %v753, %v755
  %v813 = vmax.f32 %v759, %v761
  %v814 = vmax.f32 %v763, %v765
  %v815 = vmax.f32 %v769, %v771
  %v816 = vmax.f32 %v773, %v775
  %v817 = vmax.f32 %v779, %v781
  %v818 = vmax.f32 %v783, %v785
  %v819 = vmax.f32 %v789, %v791
  %v820 = vmax.f32 %v793, %v795
  %v821 = vmax.f32 %v797, %v798
  %v822 = vmax.f32 %v799, %v800
  %v823 = vmax.f32 %v801, %v802
  %v824 = vmax.f32 %v803, %v804
  %v825 = vmax.f32 %v805, %v806
  %v826 = vmax.f32 %v807, %v808
  %v827 = vmax.f32 %v809, %v810
  %v828 = vmax.f32 %v811, %v812
  %v829 = vmax.f32 %v813, %v814
  %v830 = vmax.f32 %v815, %v816
  %v831 = vmax.f32 %v817, %v818
  %v832 = vmax.f32 %v819, %v820
  %v833 = vld [vmem:[%s4] sm:$0x1]
  %v835 = vlaneseq
  %v836 = vshrl.u32 %v835, 7
  %v837 = vsub.s32 0, %v836
  %v838 = vrot.slane %v833, %v837
  %v840 = vadd.f32 %v821, %v838
  %v841 = vadd.f32 %v822, %v838
  %v842 = vadd.f32 %v823, %v838
  %v843 = vadd.f32 %v824, %v838
  %v844 = vadd.f32 %v825, %v838
  %v845 = vadd.f32 %v826, %v838
  %v846 = vadd.f32 %v827, %v838
  %v847 = vadd.f32 %v828, %v838
  %v848 = vadd.f32 %v829, %v838
  %v849 = vadd.f32 %v830, %v838
  %v850 = vadd.f32 %v831, %v838
  %v851 = vadd.f32 %v832, %v838
  %v852 = vmax.f32 %v840, 0.0
  %v853 = vmax.f32 %v841, 0.0
  %v854 = vmax.f32 %v842, 0.0
  %v855 = vmax.f32 %v843, 0.0
  %v856 = vmax.f32 %v844, 0.0
  %v857 = vmax.f32 %v845, 0.0
  %v858 = vmax.f32 %v846, 0.0
  %v859 = vmax.f32 %v847, 0.0
  %v860 = vmax.f32 %v848, 0.0
  %v861 = vmax.f32 %v849, 0.0
  %v862 = vmax.f32 %v850, 0.0
  %v863 = vmax.f32 %v851, 0.0
  %v864 = vpack.c.bf16 %v852, %v852
  %v865 = vpack.c.bf16 %v853, %v853
  %v866 = vpack.c.bf16 %v854, %v854
  %v867 = vpack.c.bf16 %v855, %v855
  %v868 = vpack.c.bf16 %v856, %v856
  %v869 = vpack.c.bf16 %v857, %v857
  %v870 = vpack.c.bf16 %v858, %v858
  %v871 = vpack.c.bf16 %v859, %v859
  %v872 = vpack.c.bf16 %v860, %v860
  %v873 = vpack.c.bf16 %v861, %v861
  %v874 = vpack.c.bf16 %v862, %v862
  %v875 = vpack.c.bf16 %v863, %v863
  %v876 = vld [vmem:[%s2] sm:$0xff]
  %v877 = vld [vmem:[%s2 + $0x8] sm:$0xff]
  %v878 = vld [vmem:[%s2 + $0x10] sm:$0xff]
  %v879 = vld [vmem:[%s2 + $0x18] sm:$0xff]
  %v880 = vld [vmem:[%s2 + $0x20] sm:$0xff]
  %v881 = vld [vmem:[%s2 + $0x28] sm:$0xff]
  %v882 = vld [vmem:[%s2 + $0x30] sm:$0xff]
  %v883 = vld [vmem:[%s2 + $0x38] sm:$0xff]
  %v884 = vld [vmem:[%s2 + $0x40] sm:$0xff]
  %v885 = vld [vmem:[%s2 + $0x48] sm:$0xff]
  %v886 = vld [vmem:[%s2 + $0x50] sm:$0xff]
  %v887 = vld [vmem:[%s2 + $0x58] sm:$0xff]
  %v888 = vld [vmem:[%s2 + $0x60] sm:$0xff]
  %v889 = vld [vmem:[%s2 + $0x68] sm:$0xff]
  %v890 = vld [vmem:[%s2 + $0x70] sm:$0xff]
  %v891 = vld [vmem:[%s2 + $0x78] sm:$0xff]
  %s892 = scalar_lea.vmem %s2, 128
  %v893 = vld [vmem:[%s892] sm:$0xff]
  %v894 = vld [vmem:[%s892 + $0x8] sm:$0xff]
  %v895 = vld [vmem:[%s892 + $0x10] sm:$0xff]
  %v896 = vld [vmem:[%s892 + $0x18] sm:$0xff]
  %v897 = vld [vmem:[%s892 + $0x20] sm:$0xff]
  %v898 = vld [vmem:[%s892 + $0x28] sm:$0xff]
  %v899 = vld [vmem:[%s892 + $0x30] sm:$0xff]
  %v900 = vld [vmem:[%s892 + $0x38] sm:$0xff]
  %v901 = vld [vmem:[%s892 + $0x40] sm:$0xff]
  %v902 = vld [vmem:[%s892 + $0x48] sm:$0xff]
  %v903 = vld [vmem:[%s892 + $0x50] sm:$0xff]
  %v904 = vld [vmem:[%s892 + $0x58] sm:$0xff]
  %v905 = vld [vmem:[%s892 + $0x60] sm:$0xff]
  %v906 = vld [vmem:[%s892 + $0x68] sm:$0xff]
  %v907 = vld [vmem:[%s892 + $0x70] sm:$0xff]
  %v908 = vld [vmem:[%s892 + $0x78] sm:$0xff]
  %v917 = vunpack.c.l.b16 %v865
  %v918 = vunpack.c.l.b16 %v866
  %v919 = vunpack.c.l.b16 %v867
  %v920 = vunpack.c.l.b16 %v868
  %v921 = vunpack.c.l.b16 %v869
  %v922 = vunpack.c.l.b16 %v870
  %v923 = vunpack.c.l.b16 %v871
  %v924 = vunpack.c.l.b16 %v872
  %v925 = vpack.c.b16 %v918, %v917
  %v926 = vpack.c.b16 %v920, %v919
  %v927 = vpack.c.b16 %v922, %v921
  %v928 = vpack.c.b16 %v924, %v923
  %v949 = vunpack.c.l.b16 %v893
  %v950 = vunpack.c.h.b16 %v893
  %v951 = vunpack.c.l.b16 %v894
  %v952 = vunpack.c.h.b16 %v894
  %v953 = vunpack.c.l.b16 %v895
  %v954 = vunpack.c.h.b16 %v895
  %v955 = vunpack.c.l.b16 %v896
  %v956 = vunpack.c.h.b16 %v896
  %v957 = vunpack.c.l.b16 %v897
  %v958 = vunpack.c.h.b16 %v897
  %v959 = vunpack.c.l.b16 %v898
  %v960 = vunpack.c.h.b16 %v898
  %v961 = vunpack.c.l.b16 %v899
  %v962 = vunpack.c.h.b16 %v899
  %v963 = vunpack.c.l.b16 %v900
  %v964 = vunpack.c.h.b16 %v900
  %v965 = vunpack.c.l.b16 %v901
  %v966 = vunpack.c.h.b16 %v901
  %v967 = vunpack.c.l.b16 %v902
  %v968 = vunpack.c.h.b16 %v902
  %v969 = vunpack.c.l.b16 %v903
  %v970 = vunpack.c.h.b16 %v903
  %v971 = vunpack.c.l.b16 %v904
  %v972 = vunpack.c.h.b16 %v904
  %v973 = vunpack.c.l.b16 %v905
  %v974 = vunpack.c.h.b16 %v905
  %v975 = vunpack.c.l.b16 %v906
  %v976 = vunpack.c.h.b16 %v906
  %v977 = vunpack.c.l.b16 %v907
  %v978 = vunpack.c.h.b16 %v907
  %v979 = vunpack.c.l.b16 %v908
  %v980 = vunpack.c.h.b16 %v908
  %v981 = vpack.c.b16 %v951, %v949
  %v982 = vpack.c.b16 %v952, %v950
  %v983 = vpack.c.b16 %v955, %v953
  %v984 = vpack.c.b16 %v956, %v954
  %v985 = vpack.c.b16 %v959, %v957
  %v986 = vpack.c.b16 %v960, %v958
  %v987 = vpack.c.b16 %v963, %v961
  %v988 = vpack.c.b16 %v964, %v962
  %v989 = vpack.c.b16 %v967, %v965
  %v990 = vpack.c.b16 %v968, %v966
  %v991 = vpack.c.b16 %v971, %v969
  %v992 = vpack.c.b16 %v972, %v970
  %v993 = vpack.c.b16 %v975, %v973
  %v994 = vpack.c.b16 %v976, %v974
  %v995 = vpack.c.b16 %v979, %v977
  %v996 = vpack.c.b16 %v980, %v978
  %1013 = vmatprep.subr.bf16.mxu0 %v996
  %1014 = vmatpush1.bf16.msra.mxu0 %v995
  %1015 = vmatprep.subr.bf16.mxu0 %v994
  %1016 = vmatpush1.bf16.msra.mxu0 %v993
  %1017 = vmatprep.subr.bf16.mxu0 %v992
  %1018 = vmatpush1.bf16.msra.mxu0 %v991
  %1019 = vmatprep.subr.bf16.mxu0 %v990
  %1020 = vmatpush1.bf16.msra.mxu0 %v989
  %1021 = vmatprep.subr.bf16.mxu0 %v988
  %1022 = vmatpush1.bf16.msra.mxu0 %v987
  %1023 = vmatprep.subr.bf16.mxu0 %v986
  %1024 = vmatpush1.bf16.msra.mxu0 %v985
  %1025 = vmatprep.subr.bf16.mxu0 %v984
  %1026 = vmatpush1.bf16.msra.mxu0 %v983
  %1027 = vmatprep.subr.bf16.mxu0 %v982
  %1028 = vmatpush1.bf16.msra.mxu0 %v981
  %1029 = vmatprep.subr.bf16.mxu0 0
  %1030 = vmatpush2.bf16.msra.mxu0 0
  %1031 = vmatprep.subr.bf16.mxu0 0
  %1032 = vmatpush2.bf16.msra.mxu0 0
  %1033 = vmatprep.subr.bf16.mxu0 0
  %1034 = vmatpush2.bf16.msra.mxu0 0
  %1035 = vmatprep.subr.bf16.mxu0 0
  %1036 = vmatpush2.bf16.msra.mxu0 0
  %1037 = vmatprep.subr.bf16.mxu0 0
  %1038 = vmatpush2.bf16.msra.mxu0 0
  %1039 = vmatprep.subr.bf16.mxu0 0
  %1040 = vmatpush2.bf16.msra.mxu0 0
  %1041 = vmatprep.subr.bf16.mxu0 0
  %1042 = vmatpush2.bf16.msra.mxu0 0
  %1043 = vmatprep.subr.bf16.mxu0 0
  %1044 = vmatpush2.bf16.msra.mxu0 0
  %1045 = vmatprep.mubr.bf16.mxu0 0
  %1046 = vmatmul.mubr.bf16.gmra.mxu0 %v925
  %v1047 = vpop.f32.mrf.mxu0
  %v1048 = vadd.f32 0.0, %v1047
  %v1049 = vpop.f32.mrf.mxu0
  %v1050 = vadd.f32 0.0, %v1049
  %v1051 = vpop.f32.mrf.mxu0
  %v1052 = vadd.f32 0.0, %v1051
  %v1053 = vpop.f32.mrf.mxu0
  %v1054 = vadd.f32 0.0, %v1053
  %1055 = vmatprep.mubr.bf16.mxu0 0
  %1056 = vmatmul.mubr.bf16.gmra.mxu0 %v926
  %v1057 = vpop.f32.mrf.mxu0
  %v1058 = vadd.f32 0.0, %v1057
  %v1059 = vpop.f32.mrf.mxu0
  %v1060 = vadd.f32 0.0, %v1059
  %v1061 = vpop.f32.mrf.mxu0
  %v1062 = vadd.f32 0.0, %v1061
  %v1063 = vpop.f32.mrf.mxu0
  %v1064 = vadd.f32 0.0, %v1063
  %1065 = vmatprep.mubr.bf16.mxu0 0
  %1066 = vmatmul.mubr.bf16.gmra.mxu0 %v927
  %v1067 = vpop.f32.mrf.mxu0
  %v1068 = vadd.f32 0.0, %v1067
  %v1069 = vpop.f32.mrf.mxu0
  %v1070 = vadd.f32 0.0, %v1069
  %v1071 = vpop.f32.mrf.mxu0
  %v1072 = vadd.f32 0.0, %v1071
  %v1073 = vpop.f32.mrf.mxu0
  %v1074 = vadd.f32 0.0, %v1073
  %1075 = vmatprep.mubr.bf16.mxu0 0
  %1076 = vmatmul.mubr.bf16.gmra.mxu0 %v928
  %v1077 = vpop.f32.mrf.mxu0
  %v1078 = vadd.f32 0.0, %v1077
  %v1079 = vpop.f32.mrf.mxu0
  %v1080 = vadd.f32 0.0, %v1079
  %v1081 = vpop.f32.mrf.mxu0
  %v1082 = vadd.f32 0.0, %v1081
  %v1083 = vpop.f32.mrf.mxu0
  %v1084 = vadd.f32 0.0, %v1083
  %1085 = vdwg.mxu0
  %v1087 = vunpack.c.l.b16 %v864
  %v1088 = vpack.c.b16 %v917, %v1087
  %v1089 = vpack.c.b16 %v919, %v918
  %v1090 = vpack.c.b16 %v921, %v920
  %v1091 = vpack.c.b16 %v923, %v922
  %v1112 = vunpack.c.l.b16 %v876
  %v1113 = vunpack.c.h.b16 %v876
  %v1114 = vunpack.c.l.b16 %v877
  %v1115 = vunpack.c.h.b16 %v877
  %v1116 = vunpack.c.l.b16 %v878
  %v1117 = vunpack.c.h.b16 %v878
  %v1118 = vunpack.c.l.b16 %v879
  %v1119 = vunpack.c.h.b16 %v879
  %v1120 = vunpack.c.l.b16 %v880
  %v1121 = vunpack.c.h.b16 %v880
  %v1122 = vunpack.c.l.b16 %v881
  %v1123 = vunpack.c.h.b16 %v881
  %v1124 = vunpack.c.l.b16 %v882
  %v1125 = vunpack.c.h.b16 %v882
  %v1126 = vunpack.c.l.b16 %v883
  %v1127 = vunpack.c.h.b16 %v883
  %v1128 = vunpack.c.l.b16 %v884
  %v1129 = vunpack.c.h.b16 %v884
  %v1130 = vunpack.c.l.b16 %v885
  %v1131 = vunpack.c.h.b16 %v885
  %v1132 = vunpack.c.l.b16 %v886
  %v1133 = vunpack.c.h.b16 %v886
  %v1134 = vunpack.c.l.b16 %v887
  %v1135 = vunpack.c.h.b16 %v887
  %v1136 = vunpack.c.l.b16 %v888
  %v1137 = vunpack.c.h.b16 %v888
  %v1138 = vunpack.c.l.b16 %v889
  %v1139 = vunpack.c.h.b16 %v889
  %v1140 = vunpack.c.l.b16 %v890
  %v1141 = vunpack.c.h.b16 %v890
  %v1142 = vunpack.c.l.b16 %v891
  %v1143 = vunpack.c.h.b16 %v891
  %v1144 = vpack.c.b16 %v1114, %v1112
  %v1145 = vpack.c.b16 %v1115, %v1113
  %v1146 = vpack.c.b16 %v1118, %v1116
  %v1147 = vpack.c.b16 %v1119, %v1117
  %v1148 = vpack.c.b16 %v1122, %v1120
  %v1149 = vpack.c.b16 %v1123, %v1121
  %v1150 = vpack.c.b16 %v1126, %v1124
  %v1151 = vpack.c.b16 %v1127, %v1125
  %v1152 = vpack.c.b16 %v1130, %v1128
  %v1153 = vpack.c.b16 %v1131, %v1129
  %v1154 = vpack.c.b16 %v1134, %v1132
  %v1155 = vpack.c.b16 %v1135, %v1133
  %v1156 = vpack.c.b16 %v1138, %v1136
  %v1157 = vpack.c.b16 %v1139, %v1137
  %v1158 = vpack.c.b16 %v1142, %v1140
  %v1159 = vpack.c.b16 %v1143, %v1141
  %1176 = vmatprep.subr.bf16.mxu0 %v1159
  %1177 = vmatpush1.bf16.msra.mxu0 %v1158
  %1178 = vmatprep.subr.bf16.mxu0 %v1157
  %1179 = vmatpush1.bf16.msra.mxu0 %v1156
  %1180 = vmatprep.subr.bf16.mxu0 %v1155
  %1181 = vmatpush1.bf16.msra.mxu0 %v1154
  %1182 = vmatprep.subr.bf16.mxu0 %v1153
  %1183 = vmatpush1.bf16.msra.mxu0 %v1152
  %1184 = vmatprep.subr.bf16.mxu0 %v1151
  %1185 = vmatpush1.bf16.msra.mxu0 %v1150
  %1186 = vmatprep.subr.bf16.mxu0 %v1149
  %1187 = vmatpush1.bf16.msra.mxu0 %v1148
  %1188 = vmatprep.subr.bf16.mxu0 %v1147
  %1189 = vmatpush1.bf16.msra.mxu0 %v1146
  %1190 = vmatprep.subr.bf16.mxu0 %v1145
  %1191 = vmatpush1.bf16.msra.mxu0 %v1144
  %1192 = vmatprep.subr.bf16.mxu0 0
  %1193 = vmatpush2.bf16.msra.mxu0 0
  %1194 = vmatprep.subr.bf16.mxu0 0
  %1195 = vmatpush2.bf16.msra.mxu0 0
  %1196 = vmatprep.subr.bf16.mxu0 0
  %1197 = vmatpush2.bf16.msra.mxu0 0
  %1198 = vmatprep.subr.bf16.mxu0 0
  %1199 = vmatpush2.bf16.msra.mxu0 0
  %1200 = vmatprep.subr.bf16.mxu0 0
  %1201 = vmatpush2.bf16.msra.mxu0 0
  %1202 = vmatprep.subr.bf16.mxu0 0
  %1203 = vmatpush2.bf16.msra.mxu0 0
  %1204 = vmatprep.subr.bf16.mxu0 0
  %1205 = vmatpush2.bf16.msra.mxu0 0
  %1206 = vmatprep.subr.bf16.mxu0 0
  %1207 = vmatpush2.bf16.msra.mxu0 0
  %1208 = vmatprep.mubr.bf16.mxu0 0
  %1209 = vmatmul.mubr.bf16.gmra.mxu0 %v1088
  %v1210 = vpop.f32.mrf.mxu0
  %v1211 = vadd.f32 %v1048, %v1210
  %v1212 = vpop.f32.mrf.mxu0
  %v1213 = vadd.f32 %v1050, %v1212
  %v1214 = vpop.f32.mrf.mxu0
  %v1215 = vadd.f32 %v1052, %v1214
  %v1216 = vpop.f32.mrf.mxu0
  %v1217 = vadd.f32 %v1054, %v1216
  %1218 = vmatprep.mubr.bf16.mxu0 0
  %1219 = vmatmul.mubr.bf16.gmra.mxu0 %v1089
  %v1220 = vpop.f32.mrf.mxu0
  %v1221 = vadd.f32 %v1058, %v1220
  %v1222 = vpop.f32.mrf.mxu0
  %v1223 = vadd.f32 %v1060, %v1222
  %v1224 = vpop.f32.mrf.mxu0
  %v1225 = vadd.f32 %v1062, %v1224
  %v1226 = vpop.f32.mrf.mxu0
  %v1227 = vadd.f32 %v1064, %v1226
  %1228 = vmatprep.mubr.bf16.mxu0 0
  %1229 = vmatmul.mubr.bf16.gmra.mxu0 %v1090
  %v1230 = vpop.f32.mrf.mxu0
  %v1231 = vadd.f32 %v1068, %v1230
  %v1232 = vpop.f32.mrf.mxu0
  %v1233 = vadd.f32 %v1070, %v1232
  %v1234 = vpop.f32.mrf.mxu0
  %v1235 = vadd.f32 %v1072, %v1234
  %v1236 = vpop.f32.mrf.mxu0
  %v1237 = vadd.f32 %v1074, %v1236
  %1238 = vmatprep.mubr.bf16.mxu0 0
  %1239 = vmatmul.mubr.bf16.gmra.mxu0 %v1091
  %v1240 = vpop.f32.mrf.mxu0
  %v1241 = vadd.f32 %v1078, %v1240
  %v1242 = vpop.f32.mrf.mxu0
  %v1243 = vadd.f32 %v1080, %v1242
  %v1244 = vpop.f32.mrf.mxu0
  %v1245 = vadd.f32 %v1082, %v1244
  %v1246 = vpop.f32.mrf.mxu0
  %v1247 = vadd.f32 %v1084, %v1246
  %1248 = vdwg.mxu0
  %s1249 = scalar_lea.vmem %s2, 256
  %v1250 = vld [vmem:[%s1249] sm:$0xff]
  %v1251 = vld [vmem:[%s1249 + $0x8] sm:$0xff]
  %v1252 = vld [vmem:[%s1249 + $0x10] sm:$0xff]
  %v1253 = vld [vmem:[%s1249 + $0x18] sm:$0xff]
  %v1254 = vld [vmem:[%s1249 + $0x20] sm:$0xff]
  %v1255 = vld [vmem:[%s1249 + $0x28] sm:$0xff]
  %v1256 = vld [vmem:[%s1249 + $0x30] sm:$0xff]
  %v1257 = vld [vmem:[%s1249 + $0x38] sm:$0xff]
  %v1258 = vld [vmem:[%s1249 + $0x40] sm:$0xff]
  %v1259 = vld [vmem:[%s1249 + $0x48] sm:$0xff]
  %v1260 = vld [vmem:[%s1249 + $0x50] sm:$0xff]
  %v1261 = vld [vmem:[%s1249 + $0x58] sm:$0xff]
  %v1262 = vld [vmem:[%s1249 + $0x60] sm:$0xff]
  %v1263 = vld [vmem:[%s1249 + $0x68] sm:$0xff]
  %v1264 = vld [vmem:[%s1249 + $0x70] sm:$0xff]
  %v1265 = vld [vmem:[%s1249 + $0x78] sm:$0xff]
  %v1267 = vunpack.c.l.b16 %v873
  %v1268 = vpack.c.b16 %v1267, %v924
  %v1286 = vunpack.c.l.b16 %v1250
  %v1287 = vunpack.c.h.b16 %v1250
  %v1288 = vunpack.c.l.b16 %v1251
  %v1289 = vunpack.c.h.b16 %v1251
  %v1290 = vunpack.c.l.b16 %v1252
  %v1291 = vunpack.c.h.b16 %v1252
  %v1292 = vunpack.c.l.b16 %v1253
  %v1293 = vunpack.c.h.b16 %v1253
  %v1294 = vunpack.c.l.b16 %v1254
  %v1295 = vunpack.c.h.b16 %v1254
  %v1296 = vunpack.c.l.b16 %v1255
  %v1297 = vunpack.c.h.b16 %v1255
  %v1298 = vunpack.c.l.b16 %v1256
  %v1299 = vunpack.c.h.b16 %v1256
  %v1300 = vunpack.c.l.b16 %v1257
  %v1301 = vunpack.c.h.b16 %v1257
  %v1302 = vunpack.c.l.b16 %v1258
  %v1303 = vunpack.c.h.b16 %v1258
  %v1304 = vunpack.c.l.b16 %v1259
  %v1305 = vunpack.c.h.b16 %v1259
  %v1306 = vunpack.c.l.b16 %v1260
  %v1307 = vunpack.c.h.b16 %v1260
  %v1308 = vunpack.c.l.b16 %v1261
  %v1309 = vunpack.c.h.b16 %v1261
  %v1310 = vunpack.c.l.b16 %v1262
  %v1311 = vunpack.c.h.b16 %v1262
  %v1312 = vunpack.c.l.b16 %v1263
  %v1313 = vunpack.c.h.b16 %v1263
  %v1314 = vunpack.c.l.b16 %v1264
  %v1315 = vunpack.c.h.b16 %v1264
  %v1316 = vunpack.c.l.b16 %v1265
  %v1317 = vunpack.c.h.b16 %v1265
  %v1318 = vpack.c.b16 %v1288, %v1286
  %v1319 = vpack.c.b16 %v1289, %v1287
  %v1320 = vpack.c.b16 %v1292, %v1290
  %v1321 = vpack.c.b16 %v1293, %v1291
  %v1322 = vpack.c.b16 %v1296, %v1294
  %v1323 = vpack.c.b16 %v1297, %v1295
  %v1324 = vpack.c.b16 %v1300, %v1298
  %v1325 = vpack.c.b16 %v1301, %v1299
  %v1326 = vpack.c.b16 %v1304, %v1302
  %v1327 = vpack.c.b16 %v1305, %v1303
  %v1328 = vpack.c.b16 %v1308, %v1306
  %v1329 = vpack.c.b16 %v1309, %v1307
  %v1330 = vpack.c.b16 %v1312, %v1310
  %v1331 = vpack.c.b16 %v1313, %v1311
  %v1332 = vpack.c.b16 %v1316, %v1314
  %v1333 = vpack.c.b16 %v1317, %v1315
  %1350 = vmatprep.subr.bf16.mxu0 %v1333
  %1351 = vmatpush1.bf16.msra.mxu0 %v1332
  %1352 = vmatprep.subr.bf16.mxu0 %v1331
  %1353 = vmatpush1.bf16.msra.mxu0 %v1330
  %1354 = vmatprep.subr.bf16.mxu0 %v1329
  %1355 = vmatpush1.bf16.msra.mxu0 %v1328
  %1356 = vmatprep.subr.bf16.mxu0 %v1327
  %1357 = vmatpush1.bf16.msra.mxu0 %v1326
  %1358 = vmatprep.subr.bf16.mxu0 %v1325
  %1359 = vmatpush1.bf16.msra.mxu0 %v1324
  %1360 = vmatprep.subr.bf16.mxu0 %v1323
  %1361 = vmatpush1.bf16.msra.mxu0 %v1322
  %1362 = vmatprep.subr.bf16.mxu0 %v1321
  %1363 = vmatpush1.bf16.msra.mxu0 %v1320
  %1364 = vmatprep.subr.bf16.mxu0 %v1319
  %1365 = vmatpush1.bf16.msra.mxu0 %v1318
  %1366 = vmatprep.subr.bf16.mxu0 0
  %1367 = vmatpush2.bf16.msra.mxu0 0
  %1368 = vmatprep.subr.bf16.mxu0 0
  %1369 = vmatpush2.bf16.msra.mxu0 0
  %1370 = vmatprep.subr.bf16.mxu0 0
  %1371 = vmatpush2.bf16.msra.mxu0 0
  %1372 = vmatprep.subr.bf16.mxu0 0
  %1373 = vmatpush2.bf16.msra.mxu0 0
  %1374 = vmatprep.subr.bf16.mxu0 0
  %1375 = vmatpush2.bf16.msra.mxu0 0
  %1376 = vmatprep.subr.bf16.mxu0 0
  %1377 = vmatpush2.bf16.msra.mxu0 0
  %1378 = vmatprep.subr.bf16.mxu0 0
  %1379 = vmatpush2.bf16.msra.mxu0 0
  %1380 = vmatprep.subr.bf16.mxu0 0
  %1381 = vmatpush2.bf16.msra.mxu0 0
  %1382 = vmatprep.mubr.bf16.mxu0 0
  %1383 = vmatmul.mubr.bf16.gmra.mxu0 %v1089
  %v1384 = vpop.f32.mrf.mxu0
  %v1385 = vadd.f32 0.0, %v1384
  %v1386 = vpop.f32.mrf.mxu0
  %v1387 = vadd.f32 0.0, %v1386
  %v1388 = vpop.f32.mrf.mxu0
  %v1389 = vadd.f32 0.0, %v1388
  %v1390 = vpop.f32.mrf.mxu0
  %v1391 = vadd.f32 0.0, %v1390
  %1392 = vmatprep.mubr.bf16.mxu0 0
  %1393 = vmatmul.mubr.bf16.gmra.mxu0 %v1090
  %v1394 = vpop.f32.mrf.mxu0
  %v1395 = vadd.f32 0.0, %v1394
  %v1396 = vpop.f32.mrf.mxu0
  %v1397 = vadd.f32 0.0, %v1396
  %v1398 = vpop.f32.mrf.mxu0
  %v1399 = vadd.f32 0.0, %v1398
  %v1400 = vpop.f32.mrf.mxu0
  %v1401 = vadd.f32 0.0, %v1400
  %1402 = vmatprep.mubr.bf16.mxu0 0
  %1403 = vmatmul.mubr.bf16.gmra.mxu0 %v1091
  %v1404 = vpop.f32.mrf.mxu0
  %v1405 = vadd.f32 0.0, %v1404
  %v1406 = vpop.f32.mrf.mxu0
  %v1407 = vadd.f32 0.0, %v1406
  %v1408 = vpop.f32.mrf.mxu0
  %v1409 = vadd.f32 0.0, %v1408
  %v1410 = vpop.f32.mrf.mxu0
  %v1411 = vadd.f32 0.0, %v1410
  %1412 = vmatprep.mubr.bf16.mxu0 0
  %1413 = vmatmul.mubr.bf16.gmra.mxu0 %v1268
  %v1414 = vpop.f32.mrf.mxu0
  %v1415 = vadd.f32 0.0, %v1414
  %v1416 = vpop.f32.mrf.mxu0
  %v1417 = vadd.f32 0.0, %v1416
  %v1418 = vpop.f32.mrf.mxu0
  %v1419 = vadd.f32 0.0, %v1418
  %v1420 = vpop.f32.mrf.mxu0
  %v1421 = vadd.f32 0.0, %v1420
  %1422 = vdwg.mxu0
  %v1423 = vadd.f32 %v1211, %v1385
  %v1424 = vadd.f32 %v1213, %v1387
  %v1425 = vadd.f32 %v1215, %v1389
  %v1426 = vadd.f32 %v1217, %v1391
  %v1427 = vadd.f32 %v1221, %v1395
  %v1428 = vadd.f32 %v1223, %v1397
  %v1429 = vadd.f32 %v1225, %v1399
  %v1430 = vadd.f32 %v1227, %v1401
  %v1431 = vadd.f32 %v1231, %v1405
  %v1432 = vadd.f32 %v1233, %v1407
  %v1433 = vadd.f32 %v1235, %v1409
  %v1434 = vadd.f32 %v1237, %v1411
  %v1435 = vadd.f32 %v1241, %v1415
  %v1436 = vadd.f32 %v1243, %v1417
  %v1437 = vadd.f32 %v1245, %v1419
  %v1438 = vadd.f32 %v1247, %v1421
  %s1439 = scalar_lea.vmem %s2, 384
  %v1440 = vld [vmem:[%s1439] sm:$0xff]
  %v1441 = vld [vmem:[%s1439 + $0x8] sm:$0xff]
  %v1442 = vld [vmem:[%s1439 + $0x10] sm:$0xff]
  %v1443 = vld [vmem:[%s1439 + $0x18] sm:$0xff]
  %v1444 = vld [vmem:[%s1439 + $0x20] sm:$0xff]
  %v1445 = vld [vmem:[%s1439 + $0x28] sm:$0xff]
  %v1446 = vld [vmem:[%s1439 + $0x30] sm:$0xff]
  %v1447 = vld [vmem:[%s1439 + $0x38] sm:$0xff]
  %v1448 = vld [vmem:[%s1439 + $0x40] sm:$0xff]
  %v1449 = vld [vmem:[%s1439 + $0x48] sm:$0xff]
  %v1450 = vld [vmem:[%s1439 + $0x50] sm:$0xff]
  %v1451 = vld [vmem:[%s1439 + $0x58] sm:$0xff]
  %v1452 = vld [vmem:[%s1439 + $0x60] sm:$0xff]
  %v1453 = vld [vmem:[%s1439 + $0x68] sm:$0xff]
  %v1454 = vld [vmem:[%s1439 + $0x70] sm:$0xff]
  %v1455 = vld [vmem:[%s1439 + $0x78] sm:$0xff]
  %v1457 = vunpack.c.l.b16 %v874
  %v1458 = vpack.c.b16 %v1457, %v1267
  %v1476 = vunpack.c.l.b16 %v1440
  %v1477 = vunpack.c.h.b16 %v1440
  %v1478 = vunpack.c.l.b16 %v1441
  %v1479 = vunpack.c.h.b16 %v1441
  %v1480 = vunpack.c.l.b16 %v1442
  %v1481 = vunpack.c.h.b16 %v1442
  %v1482 = vunpack.c.l.b16 %v1443
  %v1483 = vunpack.c.h.b16 %v1443
  %v1484 = vunpack.c.l.b16 %v1444
  %v1485 = vunpack.c.h.b16 %v1444
  %v1486 = vunpack.c.l.b16 %v1445
  %v1487 = vunpack.c.h.b16 %v1445
  %v1488 = vunpack.c.l.b16 %v1446
  %v1489 = vunpack.c.h.b16 %v1446
  %v1490 = vunpack.c.l.b16 %v1447
  %v1491 = vunpack.c.h.b16 %v1447
  %v1492 = vunpack.c.l.b16 %v1448
  %v1493 = vunpack.c.h.b16 %v1448
  %v1494 = vunpack.c.l.b16 %v1449
  %v1495 = vunpack.c.h.b16 %v1449
  %v1496 = vunpack.c.l.b16 %v1450
  %v1497 = vunpack.c.h.b16 %v1450
  %v1498 = vunpack.c.l.b16 %v1451
  %v1499 = vunpack.c.h.b16 %v1451
  %v1500 = vunpack.c.l.b16 %v1452
  %v1501 = vunpack.c.h.b16 %v1452
  %v1502 = vunpack.c.l.b16 %v1453
  %v1503 = vunpack.c.h.b16 %v1453
  %v1504 = vunpack.c.l.b16 %v1454
  %v1505 = vunpack.c.h.b16 %v1454
  %v1506 = vunpack.c.l.b16 %v1455
  %v1507 = vunpack.c.h.b16 %v1455
  %v1508 = vpack.c.b16 %v1478, %v1476
  %v1509 = vpack.c.b16 %v1479, %v1477
  %v1510 = vpack.c.b16 %v1482, %v1480
  %v1511 = vpack.c.b16 %v1483, %v1481
  %v1512 = vpack.c.b16 %v1486, %v1484
  %v1513 = vpack.c.b16 %v1487, %v1485
  %v1514 = vpack.c.b16 %v1490, %v1488
  %v1515 = vpack.c.b16 %v1491, %v1489
  %v1516 = vpack.c.b16 %v1494, %v1492
  %v1517 = vpack.c.b16 %v1495, %v1493
  %v1518 = vpack.c.b16 %v1498, %v1496
  %v1519 = vpack.c.b16 %v1499, %v1497
  %v1520 = vpack.c.b16 %v1502, %v1500
  %v1521 = vpack.c.b16 %v1503, %v1501
  %v1522 = vpack.c.b16 %v1506, %v1504
  %v1523 = vpack.c.b16 %v1507, %v1505
  %1540 = vmatprep.subr.bf16.mxu0 %v1523
  %1541 = vmatpush1.bf16.msra.mxu0 %v1522
  %1542 = vmatprep.subr.bf16.mxu0 %v1521
  %1543 = vmatpush1.bf16.msra.mxu0 %v1520
  %1544 = vmatprep.subr.bf16.mxu0 %v1519
  %1545 = vmatpush1.bf16.msra.mxu0 %v1518
  %1546 = vmatprep.subr.bf16.mxu0 %v1517
  %1547 = vmatpush1.bf16.msra.mxu0 %v1516
  %1548 = vmatprep.subr.bf16.mxu0 %v1515
  %1549 = vmatpush1.bf16.msra.mxu0 %v1514
  %1550 = vmatprep.subr.bf16.mxu0 %v1513
  %1551 = vmatpush1.bf16.msra.mxu0 %v1512
  %1552 = vmatprep.subr.bf16.mxu0 %v1511
  %1553 = vmatpush1.bf16.msra.mxu0 %v1510
  %1554 = vmatprep.subr.bf16.mxu0 %v1509
  %1555 = vmatpush1.bf16.msra.mxu0 %v1508
  %1556 = vmatprep.subr.bf16.mxu0 0
  %1557 = vmatpush2.bf16.msra.mxu0 0
  %1558 = vmatprep.subr.bf16.mxu0 0
  %1559 = vmatpush2.bf16.msra.mxu0 0
  %1560 = vmatprep.subr.bf16.mxu0 0
  %1561 = vmatpush2.bf16.msra.mxu0 0
  %1562 = vmatprep.subr.bf16.mxu0 0
  %1563 = vmatpush2.bf16.msra.mxu0 0
  %1564 = vmatprep.subr.bf16.mxu0 0
  %1565 = vmatpush2.bf16.msra.mxu0 0
  %1566 = vmatprep.subr.bf16.mxu0 0
  %1567 = vmatpush2.bf16.msra.mxu0 0
  %1568 = vmatprep.subr.bf16.mxu0 0
  %1569 = vmatpush2.bf16.msra.mxu0 0
  %1570 = vmatprep.subr.bf16.mxu0 0
  %1571 = vmatpush2.bf16.msra.mxu0 0
  %1572 = vmatprep.mubr.bf16.mxu0 0
  %1573 = vmatmul.mubr.bf16.gmra.mxu0 %v926
  %v1574 = vpop.f32.mrf.mxu0
  %v1575 = vadd.f32 0.0, %v1574
  %v1576 = vpop.f32.mrf.mxu0
  %v1577 = vadd.f32 0.0, %v1576
  %v1578 = vpop.f32.mrf.mxu0
  %v1579 = vadd.f32 0.0, %v1578
  %v1580 = vpop.f32.mrf.mxu0
  %v1581 = vadd.f32 0.0, %v1580
  %1582 = vmatprep.mubr.bf16.mxu0 0
  %1583 = vmatmul.mubr.bf16.gmra.mxu0 %v927
  %v1584 = vpop.f32.mrf.mxu0
  %v1585 = vadd.f32 0.0, %v1584
  %v1586 = vpop.f32.mrf.mxu0
  %v1587 = vadd.f32 0.0, %v1586
  %v1588 = vpop.f32.mrf.mxu0
  %v1589 = vadd.f32 0.0, %v1588
  %v1590 = vpop.f32.mrf.mxu0
  %v1591 = vadd.f32 0.0, %v1590
  %1592 = vmatprep.mubr.bf16.mxu0 0
  %1593 = vmatmul.mubr.bf16.gmra.mxu0 %v928
  %v1594 = vpop.f32.mrf.mxu0
  %v1595 = vadd.f32 0.0, %v1594
  %v1596 = vpop.f32.mrf.mxu0
  %v1597 = vadd.f32 0.0, %v1596
  %v1598 = vpop.f32.mrf.mxu0
  %v1599 = vadd.f32 0.0, %v1598
  %v1600 = vpop.f32.mrf.mxu0
  %v1601 = vadd.f32 0.0, %v1600
  %1602 = vmatprep.mubr.bf16.mxu0 0
  %1603 = vmatmul.mubr.bf16.gmra.mxu0 %v1458
  %v1604 = vpop.f32.mrf.mxu0
  %v1605 = vadd.f32 0.0, %v1604
  %v1606 = vpop.f32.mrf.mxu0
  %v1607 = vadd.f32 0.0, %v1606
  %v1608 = vpop.f32.mrf.mxu0
  %v1609 = vadd.f32 0.0, %v1608
  %v1610 = vpop.f32.mrf.mxu0
  %v1611 = vadd.f32 0.0, %v1610
  %1612 = vdwg.mxu0
  %v1613 = vadd.f32 %v1423, %v1575
  %v1614 = vadd.f32 %v1424, %v1577
  %v1615 = vadd.f32 %v1425, %v1579
  %v1616 = vadd.f32 %v1426, %v1581
  %v1617 = vadd.f32 %v1427, %v1585
  %v1618 = vadd.f32 %v1428, %v1587
  %v1619 = vadd.f32 %v1429, %v1589
  %v1620 = vadd.f32 %v1430, %v1591
  %v1621 = vadd.f32 %v1431, %v1595
  %v1622 = vadd.f32 %v1432, %v1597
  %v1623 = vadd.f32 %v1433, %v1599
  %v1624 = vadd.f32 %v1434, %v1601
  %v1625 = vadd.f32 %v1435, %v1605
  %v1626 = vadd.f32 %v1436, %v1607
  %v1627 = vadd.f32 %v1437, %v1609
  %v1628 = vadd.f32 %v1438, %v1611
  %s1629 = scalar_lea.vmem %s2, 512
  %v1630 = vld [vmem:[%s1629] sm:$0xff]
  %v1631 = vld [vmem:[%s1629 + $0x8] sm:$0xff]
  %v1632 = vld [vmem:[%s1629 + $0x10] sm:$0xff]
  %v1633 = vld [vmem:[%s1629 + $0x18] sm:$0xff]
  %v1634 = vld [vmem:[%s1629 + $0x20] sm:$0xff]
  %v1635 = vld [vmem:[%s1629 + $0x28] sm:$0xff]
  %v1636 = vld [vmem:[%s1629 + $0x30] sm:$0xff]
  %v1637 = vld [vmem:[%s1629 + $0x38] sm:$0xff]
  %v1638 = vld [vmem:[%s1629 + $0x40] sm:$0xff]
  %v1639 = vld [vmem:[%s1629 + $0x48] sm:$0xff]
  %v1640 = vld [vmem:[%s1629 + $0x50] sm:$0xff]
  %v1641 = vld [vmem:[%s1629 + $0x58] sm:$0xff]
  %v1642 = vld [vmem:[%s1629 + $0x60] sm:$0xff]
  %v1643 = vld [vmem:[%s1629 + $0x68] sm:$0xff]
  %v1644 = vld [vmem:[%s1629 + $0x70] sm:$0xff]
  %v1645 = vld [vmem:[%s1629 + $0x78] sm:$0xff]
  %v1647 = vunpack.c.l.b16 %v875
  %v1648 = vpack.c.b16 %v1647, %v1457
  %v1666 = vunpack.c.l.b16 %v1630
  %v1667 = vunpack.c.h.b16 %v1630
  %v1668 = vunpack.c.l.b16 %v1631
  %v1669 = vunpack.c.h.b16 %v1631
  %v1670 = vunpack.c.l.b16 %v1632
  %v1671 = vunpack.c.h.b16 %v1632
  %v1672 = vunpack.c.l.b16 %v1633
  %v1673 = vunpack.c.h.b16 %v1633
  %v1674 = vunpack.c.l.b16 %v1634
  %v1675 = vunpack.c.h.b16 %v1634
  %v1676 = vunpack.c.l.b16 %v1635
  %v1677 = vunpack.c.h.b16 %v1635
  %v1678 = vunpack.c.l.b16 %v1636
  %v1679 = vunpack.c.h.b16 %v1636
  %v1680 = vunpack.c.l.b16 %v1637
  %v1681 = vunpack.c.h.b16 %v1637
  %v1682 = vunpack.c.l.b16 %v1638
  %v1683 = vunpack.c.h.b16 %v1638
  %v1684 = vunpack.c.l.b16 %v1639
  %v1685 = vunpack.c.h.b16 %v1639
  %v1686 = vunpack.c.l.b16 %v1640
  %v1687 = vunpack.c.h.b16 %v1640
  %v1688 = vunpack.c.l.b16 %v1641
  %v1689 = vunpack.c.h.b16 %v1641
  %v1690 = vunpack.c.l.b16 %v1642
  %v1691 = vunpack.c.h.b16 %v1642
  %v1692 = vunpack.c.l.b16 %v1643
  %v1693 = vunpack.c.h.b16 %v1643
  %v1694 = vunpack.c.l.b16 %v1644
  %v1695 = vunpack.c.h.b16 %v1644
  %v1696 = vunpack.c.l.b16 %v1645
  %v1697 = vunpack.c.h.b16 %v1645
  %v1698 = vpack.c.b16 %v1668, %v1666
  %v1699 = vpack.c.b16 %v1669, %v1667
  %v1700 = vpack.c.b16 %v1672, %v1670
  %v1701 = vpack.c.b16 %v1673, %v1671
  %v1702 = vpack.c.b16 %v1676, %v1674
  %v1703 = vpack.c.b16 %v1677, %v1675
  %v1704 = vpack.c.b16 %v1680, %v1678
  %v1705 = vpack.c.b16 %v1681, %v1679
  %v1706 = vpack.c.b16 %v1684, %v1682
  %v1707 = vpack.c.b16 %v1685, %v1683
  %v1708 = vpack.c.b16 %v1688, %v1686
  %v1709 = vpack.c.b16 %v1689, %v1687
  %v1710 = vpack.c.b16 %v1692, %v1690
  %v1711 = vpack.c.b16 %v1693, %v1691
  %v1712 = vpack.c.b16 %v1696, %v1694
  %v1713 = vpack.c.b16 %v1697, %v1695
  %1730 = vmatprep.subr.bf16.mxu0 %v1713
  %1731 = vmatpush1.bf16.msra.mxu0 %v1712
  %1732 = vmatprep.subr.bf16.mxu0 %v1711
  %1733 = vmatpush1.bf16.msra.mxu0 %v1710
  %1734 = vmatprep.subr.bf16.mxu0 %v1709
  %1735 = vmatpush1.bf16.msra.mxu0 %v1708
  %1736 = vmatprep.subr.bf16.mxu0 %v1707
  %1737 = vmatpush1.bf16.msra.mxu0 %v1706
  %1738 = vmatprep.subr.bf16.mxu0 %v1705
  %1739 = vmatpush1.bf16.msra.mxu0 %v1704
  %1740 = vmatprep.subr.bf16.mxu0 %v1703
  %1741 = vmatpush1.bf16.msra.mxu0 %v1702
  %1742 = vmatprep.subr.bf16.mxu0 %v1701
  %1743 = vmatpush1.bf16.msra.mxu0 %v1700
  %1744 = vmatprep.subr.bf16.mxu0 %v1699
  %1745 = vmatpush1.bf16.msra.mxu0 %v1698
  %1746 = vmatprep.subr.bf16.mxu0 0
  %1747 = vmatpush2.bf16.msra.mxu0 0
  %1748 = vmatprep.subr.bf16.mxu0 0
  %1749 = vmatpush2.bf16.msra.mxu0 0
  %1750 = vmatprep.subr.bf16.mxu0 0
  %1751 = vmatpush2.bf16.msra.mxu0 0
  %1752 = vmatprep.subr.bf16.mxu0 0
  %1753 = vmatpush2.bf16.msra.mxu0 0
  %1754 = vmatprep.subr.bf16.mxu0 0
  %1755 = vmatpush2.bf16.msra.mxu0 0
  %1756 = vmatprep.subr.bf16.mxu0 0
  %1757 = vmatpush2.bf16.msra.mxu0 0
  %1758 = vmatprep.subr.bf16.mxu0 0
  %1759 = vmatpush2.bf16.msra.mxu0 0
  %1760 = vmatprep.subr.bf16.mxu0 0
  %1761 = vmatpush2.bf16.msra.mxu0 0
  %1762 = vmatprep.mubr.bf16.mxu0 0
  %1763 = vmatmul.mubr.bf16.gmra.mxu0 %v1090
  %v1764 = vpop.f32.mrf.mxu0
  %v1765 = vadd.f32 0.0, %v1764
  %v1766 = vpop.f32.mrf.mxu0
  %v1767 = vadd.f32 0.0, %v1766
  %v1768 = vpop.f32.mrf.mxu0
  %v1769 = vadd.f32 0.0, %v1768
  %v1770 = vpop.f32.mrf.mxu0
  %v1771 = vadd.f32 0.0, %v1770
  %1772 = vmatprep.mubr.bf16.mxu0 0
  %1773 = vmatmul.mubr.bf16.gmra.mxu0 %v1091
  %v1774 = vpop.f32.mrf.mxu0
  %v1775 = vadd.f32 0.0, %v1774
  %v1776 = vpop.f32.mrf.mxu0
  %v1777 = vadd.f32 0.0, %v1776
  %v1778 = vpop.f32.mrf.mxu0
  %v1779 = vadd.f32 0.0, %v1778
  %v1780 = vpop.f32.mrf.mxu0
  %v1781 = vadd.f32 0.0, %v1780
  %1782 = vmatprep.mubr.bf16.mxu0 0
  %1783 = vmatmul.mubr.bf16.gmra.mxu0 %v1268
  %v1784 = vpop.f32.mrf.mxu0
  %v1785 = vadd.f32 0.0, %v1784
  %v1786 = vpop.f32.mrf.mxu0
  %v1787 = vadd.f32 0.0, %v1786
  %v1788 = vpop.f32.mrf.mxu0
  %v1789 = vadd.f32 0.0, %v1788
  %v1790 = vpop.f32.mrf.mxu0
  %v1791 = vadd.f32 0.0, %v1790
  %1792 = vmatprep.mubr.bf16.mxu0 0
  %1793 = vmatmul.mubr.bf16.gmra.mxu0 %v1648
  %v1794 = vpop.f32.mrf.mxu0
  %v1795 = vadd.f32 0.0, %v1794
  %v1796 = vpop.f32.mrf.mxu0
  %v1797 = vadd.f32 0.0, %v1796
  %v1798 = vpop.f32.mrf.mxu0
  %v1799 = vadd.f32 0.0, %v1798
  %v1800 = vpop.f32.mrf.mxu0
  %v1801 = vadd.f32 0.0, %v1800
  %1802 = vdwg.mxu0
  %v1803 = vadd.f32 %v1613, %v1765
  %v1804 = vadd.f32 %v1614, %v1767
  %v1805 = vadd.f32 %v1615, %v1769
  %v1806 = vadd.f32 %v1616, %v1771
  %v1807 = vadd.f32 %v1617, %v1775
  %v1808 = vadd.f32 %v1618, %v1777
  %v1809 = vadd.f32 %v1619, %v1779
  %v1810 = vadd.f32 %v1620, %v1781
  %v1811 = vadd.f32 %v1621, %v1785
  %v1812 = vadd.f32 %v1622, %v1787
  %v1813 = vadd.f32 %v1623, %v1789
  %v1814 = vadd.f32 %v1624, %v1791
  %v1815 = vadd.f32 %v1625, %v1795
  %v1816 = vadd.f32 %v1626, %v1797
  %v1817 = vadd.f32 %v1627, %v1799
  %v1818 = vadd.f32 %v1628, %v1801
  %v1819 = vmax.f32 %v1803, %v1804
  %v1820 = vmax.f32 %v1805, %v1806
  %v1821 = vmax.f32 %v1807, %v1808
  %v1822 = vmax.f32 %v1809, %v1810
  %v1823 = vmax.f32 %v1811, %v1812
  %v1824 = vmax.f32 %v1813, %v1814
  %v1825 = vmax.f32 %v1815, %v1816
  %v1826 = vmax.f32 %v1817, %v1818
  %v1827 = vmax.f32 %v1819, %v1820
  %v1828 = vmax.f32 %v1821, %v1822
  %v1829 = vmax.f32 %v1823, %v1824
  %v1830 = vmax.f32 %v1825, %v1826
  %v1831 = vld [vmem:[%s5] sm:$0x1]
  %v1833 = vlaneseq
  %v1834 = vshrl.u32 %v1833, 7
  %v1835 = vsub.s32 0, %v1834
  %v1836 = vrot.slane %v1831, %v1835
  %v1838 = vadd.f32 %v1827, %v1836
  %v1839 = vadd.f32 %v1828, %v1836
  %v1840 = vadd.f32 %v1829, %v1836
  %v1841 = vadd.f32 %v1830, %v1836
  %v1842 = vmax.f32 %v1838, 0.0
  %v1843 = vmax.f32 %v1839, 0.0
  %v1844 = vmax.f32 %v1840, 0.0
  %v1845 = vmax.f32 %v1841, 0.0
  %v1846 = vpack.c.bf16 %v1842, %v1842
  %v1847 = vpack.c.bf16 %v1843, %v1843
  %v1848 = vpack.c.bf16 %v1844, %v1844
  %v1849 = vpack.c.bf16 %v1845, %v1845
  %v1850 = vld [vmem:[%s6] sm:$0x1]
  %v1852 = vlaneseq
  %v1853 = vshrl.u32 %v1852, 7
  %v1854 = vsub.s32 0, %v1853
  %v1855 = vrot.slane %v1850, %v1854
  %v1857 = vadd.f32 %v1855, 0.0
  %v1858 = vld [vmem:[%s3] sm:$0xf]
  %v1859 = vld [vmem:[%s3 + $0x4] sm:$0xf]
  %v1860 = vld [vmem:[%s3 + $0x8] sm:$0xf]
  %v1861 = vld [vmem:[%s3 + $0xc] sm:$0xf]
  %v1862 = vld [vmem:[%s3 + $0x10] sm:$0xf]
  %v1863 = vld [vmem:[%s3 + $0x14] sm:$0xf]
  %v1864 = vld [vmem:[%s3 + $0x18] sm:$0xf]
  %v1865 = vld [vmem:[%s3 + $0x1c] sm:$0xf]
  %v1866 = vld [vmem:[%s3 + $0x20] sm:$0xf]
  %v1867 = vld [vmem:[%s3 + $0x24] sm:$0xf]
  %v1868 = vld [vmem:[%s3 + $0x28] sm:$0xf]
  %v1869 = vld [vmem:[%s3 + $0x2c] sm:$0xf]
  %v1870 = vld [vmem:[%s3 + $0x30] sm:$0xf]
  %v1871 = vld [vmem:[%s3 + $0x34] sm:$0xf]
  %v1872 = vld [vmem:[%s3 + $0x38] sm:$0xf]
  %v1873 = vld [vmem:[%s3 + $0x3c] sm:$0xf]
  %v1890 = vunpack.c.l.b16 %v1858
  %v1891 = vunpack.c.l.b16 %v1859
  %v1892 = vunpack.c.l.b16 %v1860
  %v1893 = vunpack.c.l.b16 %v1861
  %v1894 = vunpack.c.l.b16 %v1862
  %v1895 = vunpack.c.l.b16 %v1863
  %v1896 = vunpack.c.l.b16 %v1864
  %v1897 = vunpack.c.l.b16 %v1865
  %v1898 = vunpack.c.l.b16 %v1866
  %v1899 = vunpack.c.l.b16 %v1867
  %v1900 = vunpack.c.l.b16 %v1868
  %v1901 = vunpack.c.l.b16 %v1869
  %v1902 = vunpack.c.l.b16 %v1870
  %v1903 = vunpack.c.l.b16 %v1871
  %v1904 = vunpack.c.l.b16 %v1872
  %v1905 = vunpack.c.l.b16 %v1873
  %v1906 = vpack.c.b16 %v1891, %v1890
  %v1907 = vpack.c.b16 %v1893, %v1892
  %v1908 = vpack.c.b16 %v1895, %v1894
  %v1909 = vpack.c.b16 %v1897, %v1896
  %v1910 = vpack.c.b16 %v1899, %v1898
  %v1911 = vpack.c.b16 %v1901, %v1900
  %v1912 = vpack.c.b16 %v1903, %v1902
  %v1913 = vpack.c.b16 %v1905, %v1904
  %1922 = vmatprep.subr.bf16.mxu0 0
  %1923 = vmatpush1.bf16.msra.mxu0 %v1913
  %1924 = vmatprep.subr.bf16.mxu0 0
  %1925 = vmatpush1.bf16.msra.mxu0 %v1912
  %1926 = vmatprep.subr.bf16.mxu0 0
  %1927 = vmatpush1.bf16.msra.mxu0 %v1911
  %1928 = vmatprep.subr.bf16.mxu0 0
  %1929 = vmatpush1.bf16.msra.mxu0 %v1910
  %1930 = vmatprep.subr.bf16.mxu0 0
  %1931 = vmatpush1.bf16.msra.mxu0 %v1909
  %1932 = vmatprep.subr.bf16.mxu0 0
  %1933 = vmatpush1.bf16.msra.mxu0 %v1908
  %1934 = vmatprep.subr.bf16.mxu0 0
  %1935 = vmatpush1.bf16.msra.mxu0 %v1907
  %1936 = vmatprep.subr.bf16.mxu0 0
  %1937 = vmatpush1.bf16.msra.mxu0 %v1906
  %1938 = vmatprep.subr.bf16.mxu0 0
  %1939 = vmatpush2.bf16.msra.mxu0 0
  %1940 = vmatprep.subr.bf16.mxu0 0
  %1941 = vmatpush2.bf16.msra.mxu0 0
  %1942 = vmatprep.subr.bf16.mxu0 0
  %1943 = vmatpush2.bf16.msra.mxu0 0
  %1944 = vmatprep.subr.bf16.mxu0 0
  %1945 = vmatpush2.bf16.msra.mxu0 0
  %1946 = vmatprep.subr.bf16.mxu0 0
  %1947 = vmatpush2.bf16.msra.mxu0 0
  %1948 = vmatprep.subr.bf16.mxu0 0
  %1949 = vmatpush2.bf16.msra.mxu0 0
  %1950 = vmatprep.subr.bf16.mxu0 0
  %1951 = vmatpush2.bf16.msra.mxu0 0
  %1952 = vmatprep.subr.bf16.mxu0 0
  %1953 = vmatpush2.bf16.msra.mxu0 0
  %1954 = vmatprep.mubr.bf16.mxu0 0
  %1955 = vmatmul.mubr.bf16.gmra.mxu0 %v1846
  %v1956 = vpop.f32.mrf.mxu0
  %v1957 = vadd.f32 0.0, %v1956
  %v1958 = vpop.f32.mrf.mxu0
  %v1959 = vpop.f32.mrf.mxu0
  %v1960 = vpop.f32.mrf.mxu0
  %1961 = vdwg.mxu0
  %v1962 = vadd.f32 %v1857, %v1957
  %s1963 = scalar_lea.vmem %s3, 64
  %v1964 = vld [vmem:[%s1963] sm:$0xf]
  %v1965 = vld [vmem:[%s1963 + $0x4] sm:$0xf]
  %v1966 = vld [vmem:[%s1963 + $0x8] sm:$0xf]
  %v1967 = vld [vmem:[%s1963 + $0xc] sm:$0xf]
  %v1968 = vld [vmem:[%s1963 + $0x10] sm:$0xf]
  %v1969 = vld [vmem:[%s1963 + $0x14] sm:$0xf]
  %v1970 = vld [vmem:[%s1963 + $0x18] sm:$0xf]
  %v1971 = vld [vmem:[%s1963 + $0x1c] sm:$0xf]
  %v1972 = vld [vmem:[%s1963 + $0x20] sm:$0xf]
  %v1973 = vld [vmem:[%s1963 + $0x24] sm:$0xf]
  %v1974 = vld [vmem:[%s1963 + $0x28] sm:$0xf]
  %v1975 = vld [vmem:[%s1963 + $0x2c] sm:$0xf]
  %v1976 = vld [vmem:[%s1963 + $0x30] sm:$0xf]
  %v1977 = vld [vmem:[%s1963 + $0x34] sm:$0xf]
  %v1978 = vld [vmem:[%s1963 + $0x38] sm:$0xf]
  %v1979 = vld [vmem:[%s1963 + $0x3c] sm:$0xf]
  %v1996 = vunpack.c.l.b16 %v1964
  %v1997 = vunpack.c.l.b16 %v1965
  %v1998 = vunpack.c.l.b16 %v1966
  %v1999 = vunpack.c.l.b16 %v1967
  %v2000 = vunpack.c.l.b16 %v1968
  %v2001 = vunpack.c.l.b16 %v1969
  %v2002 = vunpack.c.l.b16 %v1970
  %v2003 = vunpack.c.l.b16 %v1971
  %v2004 = vunpack.c.l.b16 %v1972
  %v2005 = vunpack.c.l.b16 %v1973
  %v2006 = vunpack.c.l.b16 %v1974
  %v2007 = vunpack.c.l.b16 %v1975
  %v2008 = vunpack.c.l.b16 %v1976
  %v2009 = vunpack.c.l.b16 %v1977
  %v2010 = vunpack.c.l.b16 %v1978
  %v2011 = vunpack.c.l.b16 %v1979
  %v2012 = vpack.c.b16 %v1997, %v1996
  %v2013 = vpack.c.b16 %v1999, %v1998
  %v2014 = vpack.c.b16 %v2001, %v2000
  %v2015 = vpack.c.b16 %v2003, %v2002
  %v2016 = vpack.c.b16 %v2005, %v2004
  %v2017 = vpack.c.b16 %v2007, %v2006
  %v2018 = vpack.c.b16 %v2009, %v2008
  %v2019 = vpack.c.b16 %v2011, %v2010
  %2028 = vmatprep.subr.bf16.mxu0 0
  %2029 = vmatpush1.bf16.msra.mxu0 %v2019
  %2030 = vmatprep.subr.bf16.mxu0 0
  %2031 = vmatpush1.bf16.msra.mxu0 %v2018
  %2032 = vmatprep.subr.bf16.mxu0 0
  %2033 = vmatpush1.bf16.msra.mxu0 %v2017
  %2034 = vmatprep.subr.bf16.mxu0 0
  %2035 = vmatpush1.bf16.msra.mxu0 %v2016
  %2036 = vmatprep.subr.bf16.mxu0 0
  %2037 = vmatpush1.bf16.msra.mxu0 %v2015
  %2038 = vmatprep.subr.bf16.mxu0 0
  %2039 = vmatpush1.bf16.msra.mxu0 %v2014
  %2040 = vmatprep.subr.bf16.mxu0 0
  %2041 = vmatpush1.bf16.msra.mxu0 %v2013
  %2042 = vmatprep.subr.bf16.mxu0 0
  %2043 = vmatpush1.bf16.msra.mxu0 %v2012
  %2044 = vmatprep.subr.bf16.mxu0 0
  %2045 = vmatpush2.bf16.msra.mxu0 0
  %2046 = vmatprep.subr.bf16.mxu0 0
  %2047 = vmatpush2.bf16.msra.mxu0 0
  %2048 = vmatprep.subr.bf16.mxu0 0
  %2049 = vmatpush2.bf16.msra.mxu0 0
  %2050 = vmatprep.subr.bf16.mxu0 0
  %2051 = vmatpush2.bf16.msra.mxu0 0
  %2052 = vmatprep.subr.bf16.mxu0 0
  %2053 = vmatpush2.bf16.msra.mxu0 0
  %2054 = vmatprep.subr.bf16.mxu0 0
  %2055 = vmatpush2.bf16.msra.mxu0 0
  %2056 = vmatprep.subr.bf16.mxu0 0
  %2057 = vmatpush2.bf16.msra.mxu0 0
  %2058 = vmatprep.subr.bf16.mxu0 0
  %2059 = vmatpush2.bf16.msra.mxu0 0
  %2060 = vmatprep.mubr.bf16.mxu0 0
  %2061 = vmatmul.mubr.bf16.gmra.mxu0 %v1847
  %v2062 = vpop.f32.mrf.mxu0
  %v2063 = vadd.f32 0.0, %v2062
  %v2064 = vpop.f32.mrf.mxu0
  %v2065 = vpop.f32.mrf.mxu0
  %v2066 = vpop.f32.mrf.mxu0
  %2067 = vdwg.mxu0
  %v2068 = vadd.f32 %v1962, %v2063
  %s2069 = scalar_lea.vmem %s3, 128
  %v2070 = vld [vmem:[%s2069] sm:$0xf]
  %v2071 = vld [vmem:[%s2069 + $0x4] sm:$0xf]
  %v2072 = vld [vmem:[%s2069 + $0x8] sm:$0xf]
  %v2073 = vld [vmem:[%s2069 + $0xc] sm:$0xf]
  %v2074 = vld [vmem:[%s2069 + $0x10] sm:$0xf]
  %v2075 = vld [vmem:[%s2069 + $0x14] sm:$0xf]
  %v2076 = vld [vmem:[%s2069 + $0x18] sm:$0xf]
  %v2077 = vld [vmem:[%s2069 + $0x1c] sm:$0xf]
  %v2078 = vld [vmem:[%s2069 + $0x20] sm:$0xf]
  %v2079 = vld [vmem:[%s2069 + $0x24] sm:$0xf]
  %v2080 = vld [vmem:[%s2069 + $0x28] sm:$0xf]
  %v2081 = vld [vmem:[%s2069 + $0x2c] sm:$0xf]
  %v2082 = vld [vmem:[%s2069 + $0x30] sm:$0xf]
  %v2083 = vld [vmem:[%s2069 + $0x34] sm:$0xf]
  %v2084 = vld [vmem:[%s2069 + $0x38] sm:$0xf]
  %v2085 = vld [vmem:[%s2069 + $0x3c] sm:$0xf]
  %v2102 = vunpack.c.l.b16 %v2070
  %v2103 = vunpack.c.l.b16 %v2071
  %v2104 = vunpack.c.l.b16 %v2072
  %v2105 = vunpack.c.l.b16 %v2073
  %v2106 = vunpack.c.l.b16 %v2074
  %v2107 = vunpack.c.l.b16 %v2075
  %v2108 = vunpack.c.l.b16 %v2076
  %v2109 = vunpack.c.l.b16 %v2077
  %v2110 = vunpack.c.l.b16 %v2078
  %v2111 = vunpack.c.l.b16 %v2079
  %v2112 = vunpack.c.l.b16 %v2080
  %v2113 = vunpack.c.l.b16 %v2081
  %v2114 = vunpack.c.l.b16 %v2082
  %v2115 = vunpack.c.l.b16 %v2083
  %v2116 = vunpack.c.l.b16 %v2084
  %v2117 = vunpack.c.l.b16 %v2085
  %v2118 = vpack.c.b16 %v2103, %v2102
  %v2119 = vpack.c.b16 %v2105, %v2104
  %v2120 = vpack.c.b16 %v2107, %v2106
  %v2121 = vpack.c.b16 %v2109, %v2108
  %v2122 = vpack.c.b16 %v2111, %v2110
  %v2123 = vpack.c.b16 %v2113, %v2112
  %v2124 = vpack.c.b16 %v2115, %v2114
  %v2125 = vpack.c.b16 %v2117, %v2116
  %2134 = vmatprep.subr.bf16.mxu0 0
  %2135 = vmatpush1.bf16.msra.mxu0 %v2125
  %2136 = vmatprep.subr.bf16.mxu0 0
  %2137 = vmatpush1.bf16.msra.mxu0 %v2124
  %2138 = vmatprep.subr.bf16.mxu0 0
  %2139 = vmatpush1.bf16.msra.mxu0 %v2123
  %2140 = vmatprep.subr.bf16.mxu0 0
  %2141 = vmatpush1.bf16.msra.mxu0 %v2122
  %2142 = vmatprep.subr.bf16.mxu0 0
  %2143 = vmatpush1.bf16.msra.mxu0 %v2121
  %2144 = vmatprep.subr.bf16.mxu0 0
  %2145 = vmatpush1.bf16.msra.mxu0 %v2120
  %2146 = vmatprep.subr.bf16.mxu0 0
  %2147 = vmatpush1.bf16.msra.mxu0 %v2119
  %2148 = vmatprep.subr.bf16.mxu0 0
  %2149 = vmatpush1.bf16.msra.mxu0 %v2118
  %2150 = vmatprep.subr.bf16.mxu0 0
  %2151 = vmatpush2.bf16.msra.mxu0 0
  %2152 = vmatprep.subr.bf16.mxu0 0
  %2153 = vmatpush2.bf16.msra.mxu0 0
  %2154 = vmatprep.subr.bf16.mxu0 0
  %2155 = vmatpush2.bf16.msra.mxu0 0
  %2156 = vmatprep.subr.bf16.mxu0 0
  %2157 = vmatpush2.bf16.msra.mxu0 0
  %2158 = vmatprep.subr.bf16.mxu0 0
  %2159 = vmatpush2.bf16.msra.mxu0 0
  %2160 = vmatprep.subr.bf16.mxu0 0
  %2161 = vmatpush2.bf16.msra.mxu0 0
  %2162 = vmatprep.subr.bf16.mxu0 0
  %2163 = vmatpush2.bf16.msra.mxu0 0
  %2164 = vmatprep.subr.bf16.mxu0 0
  %2165 = vmatpush2.bf16.msra.mxu0 0
  %2166 = vmatprep.mubr.bf16.mxu0 0
  %2167 = vmatmul.mubr.bf16.gmra.mxu0 %v1848
  %v2168 = vpop.f32.mrf.mxu0
  %v2169 = vadd.f32 0.0, %v2168
  %v2170 = vpop.f32.mrf.mxu0
  %v2171 = vpop.f32.mrf.mxu0
  %v2172 = vpop.f32.mrf.mxu0
  %2173 = vdwg.mxu0
  %v2174 = vadd.f32 %v2068, %v2169
  %s2175 = scalar_lea.vmem %s3, 192
  %v2176 = vld [vmem:[%s2175] sm:$0xf]
  %v2177 = vld [vmem:[%s2175 + $0x4] sm:$0xf]
  %v2178 = vld [vmem:[%s2175 + $0x8] sm:$0xf]
  %v2179 = vld [vmem:[%s2175 + $0xc] sm:$0xf]
  %v2180 = vld [vmem:[%s2175 + $0x10] sm:$0xf]
  %v2181 = vld [vmem:[%s2175 + $0x14] sm:$0xf]
  %v2182 = vld [vmem:[%s2175 + $0x18] sm:$0xf]
  %v2183 = vld [vmem:[%s2175 + $0x1c] sm:$0xf]
  %v2184 = vld [vmem:[%s2175 + $0x20] sm:$0xf]
  %v2185 = vld [vmem:[%s2175 + $0x24] sm:$0xf]
  %v2186 = vld [vmem:[%s2175 + $0x28] sm:$0xf]
  %v2187 = vld [vmem:[%s2175 + $0x2c] sm:$0xf]
  %v2188 = vld [vmem:[%s2175 + $0x30] sm:$0xf]
  %v2189 = vld [vmem:[%s2175 + $0x34] sm:$0xf]
  %v2190 = vld [vmem:[%s2175 + $0x38] sm:$0xf]
  %v2191 = vld [vmem:[%s2175 + $0x3c] sm:$0xf]
  %v2208 = vunpack.c.l.b16 %v2176
  %v2209 = vunpack.c.l.b16 %v2177
  %v2210 = vunpack.c.l.b16 %v2178
  %v2211 = vunpack.c.l.b16 %v2179
  %v2212 = vunpack.c.l.b16 %v2180
  %v2213 = vunpack.c.l.b16 %v2181
  %v2214 = vunpack.c.l.b16 %v2182
  %v2215 = vunpack.c.l.b16 %v2183
  %v2216 = vunpack.c.l.b16 %v2184
  %v2217 = vunpack.c.l.b16 %v2185
  %v2218 = vunpack.c.l.b16 %v2186
  %v2219 = vunpack.c.l.b16 %v2187
  %v2220 = vunpack.c.l.b16 %v2188
  %v2221 = vunpack.c.l.b16 %v2189
  %v2222 = vunpack.c.l.b16 %v2190
  %v2223 = vunpack.c.l.b16 %v2191
  %v2224 = vpack.c.b16 %v2209, %v2208
  %v2225 = vpack.c.b16 %v2211, %v2210
  %v2226 = vpack.c.b16 %v2213, %v2212
  %v2227 = vpack.c.b16 %v2215, %v2214
  %v2228 = vpack.c.b16 %v2217, %v2216
  %v2229 = vpack.c.b16 %v2219, %v2218
  %v2230 = vpack.c.b16 %v2221, %v2220
  %v2231 = vpack.c.b16 %v2223, %v2222
  %2240 = vmatprep.subr.bf16.mxu0 0
  %2241 = vmatpush1.bf16.msra.mxu0 %v2231
  %2242 = vmatprep.subr.bf16.mxu0 0
  %2243 = vmatpush1.bf16.msra.mxu0 %v2230
  %2244 = vmatprep.subr.bf16.mxu0 0
  %2245 = vmatpush1.bf16.msra.mxu0 %v2229
  %2246 = vmatprep.subr.bf16.mxu0 0
  %2247 = vmatpush1.bf16.msra.mxu0 %v2228
  %2248 = vmatprep.subr.bf16.mxu0 0
  %2249 = vmatpush1.bf16.msra.mxu0 %v2227
  %2250 = vmatprep.subr.bf16.mxu0 0
  %2251 = vmatpush1.bf16.msra.mxu0 %v2226
  %2252 = vmatprep.subr.bf16.mxu0 0
  %2253 = vmatpush1.bf16.msra.mxu0 %v2225
  %2254 = vmatprep.subr.bf16.mxu0 0
  %2255 = vmatpush1.bf16.msra.mxu0 %v2224
  %2256 = vmatprep.subr.bf16.mxu0 0
  %2257 = vmatpush2.bf16.msra.mxu0 0
  %2258 = vmatprep.subr.bf16.mxu0 0
  %2259 = vmatpush2.bf16.msra.mxu0 0
  %2260 = vmatprep.subr.bf16.mxu0 0
  %2261 = vmatpush2.bf16.msra.mxu0 0
  %2262 = vmatprep.subr.bf16.mxu0 0
  %2263 = vmatpush2.bf16.msra.mxu0 0
  %2264 = vmatprep.subr.bf16.mxu0 0
  %2265 = vmatpush2.bf16.msra.mxu0 0
  %2266 = vmatprep.subr.bf16.mxu0 0
  %2267 = vmatpush2.bf16.msra.mxu0 0
  %2268 = vmatprep.subr.bf16.mxu0 0
  %2269 = vmatpush2.bf16.msra.mxu0 0
  %2270 = vmatprep.subr.bf16.mxu0 0
  %2271 = vmatpush2.bf16.msra.mxu0 0
  %2272 = vmatprep.mubr.bf16.mxu0 0
  %2273 = vmatmul.mubr.bf16.gmra.mxu0 %v1849
  %v2274 = vpop.f32.mrf.mxu0
  %v2275 = vadd.f32 0.0, %v2274
  %v2276 = vpop.f32.mrf.mxu0
  %v2277 = vpop.f32.mrf.mxu0
  %v2278 = vpop.f32.mrf.mxu0
  %2279 = vdwg.mxu0
  %v2280 = vadd.f32 %v2174, %v2275
  %2281 = vst [vmem:[%s7] sm:$0xff] %v2280
  // Predicated region
  $region30: #{net_forward.1} parent=0 // pred_check
    _
  $region31: #{net_forward.1} parent=0 // pred_check_branch
    %2283 = sbr.rel (0) target = $region33
  $region32: #{net_forward.1} parent=0 // pred_region
    _
  $region33: #{net_forward.1} parent=0 // pred_fallthru
    _
  // Predicated region
  $region34: #{net_forward.1} parent=0 // pred_check
    _
  $region35: #{net_forward.1} parent=0 // pred_check_branch
    %2285 = sbr.rel (0) target = $region37
  $region36: #{net_forward.1} parent=0 // pred_region
    _
  $region37: #{net_forward.1} parent=0 // pred_fallthru
    _

</llo_original>
